<compile_context>
chip_gen: v5e
topology: v5e:2x2
jax: 0.10.0
libtpu: 0.0.40
codegen_flags: <defaults>
</compile_context>

<pallas_src>
import functools

import jax
import jax.numpy as jnp
from jax.experimental import pallas as pl
from jax.experimental.pallas import tpu as pltpu


# ----------------------------- Pallas kernel --------------------------------

def _resblock_kernel(xq_ref, xf_ref,
                     ln1g_ref, ln1b_ref,
                     wq_ref, bq_ref, wkv_ref, bkv_ref,
                     wout_ref, bout_ref,
                     ln2g_ref, ln2b_ref,
                     wfc_ref, bfc_ref, wproj_ref, bproj_ref,
                     o_ref, w_ref,
                     q_scr, k_scr, v_scr, att_scr,
                     *, n_heads, eps):
    f32, bf16 = jnp.float32, jnp.bfloat16
    xq = xq_ref[0]                    # (Tq, D) query rows / residual stream
    xf = xf_ref[0]                    # (S,  D) full sequence (keys / values)
    Tq, D = xq.shape
    S = xf.shape[0]
    hd = D // n_heads

    def ln(v, g_ref, b_ref):          # f32 statistics (matches torch LayerNorm)
        m = jnp.mean(v, axis=-1, keepdims=True)
        c = v - m
        var = jnp.mean(c * c, axis=-1, keepdims=True)
        return c * jax.lax.rsqrt(var + eps) * g_ref[...] + b_ref[...]

    # ---- pre-LN ----
    hq = ln(xq, ln1g_ref, ln1b_ref)                       # (Tq, D)
    hf = ln(xf, ln1g_ref, ln1b_ref)                       # (S,  D)

    # ---- fused projections: bf16 operands, f32 accumulation (full K=D) ----
    # q-scale (1/sqrt(hd)) is already folded into wq/bq by the wrapper.
    q = jnp.dot(hq.astype(bf16), wq_ref[...],
                preferred_element_type=f32) + bq_ref[...]           # (Tq, D)
    kv = jnp.dot(hf.astype(bf16), wkv_ref[...],
                 preferred_element_type=f32) + bkv_ref[...]         # (S, 2D)

    # ---- split heads into head-leading scratch (static lane slices only) ----
    for h in range(n_heads):
        lo, hi = h * hd, (h + 1) * hd
        q_scr[h] = q[:, lo:hi]
        k_scr[h] = kv[:, lo:hi]
        v_scr[h] = kv[:, D + lo:D + hi]

    # ---- head-batched attention (single batched contractions, no .T) ----
    qh = q_scr[...].astype(bf16)                          # (H, Tq, hd)
    kh = k_scr[...].astype(bf16)                          # (H, S,  hd)
    vh = v_scr[...].astype(bf16)                          # (H, S,  hd)
    scores = jnp.einsum('hqd,hkd->hqk', qh, kh,
                        preferred_element_type=f32)       # (H, Tq, S) f32
    scores = scores - jnp.max(scores, axis=-1, keepdims=True)
    p = jnp.exp(scores)
    p = p * pl.reciprocal(jnp.sum(p, axis=-1, keepdims=True), approx=True)
    w_ref[0] = p                                          # per-head attn weights

    ctx = jnp.einsum('hqk,hkd->hqd', p.astype(bf16), vh,
                     preferred_element_type=f32)          # (H, Tq, hd)

    # pack heads back to (Tq, D) at static lane offsets, then ONE out-proj.
    for h in range(n_heads):
        att_scr[:, h * hd:(h + 1) * hd] = ctx[h]
    attn = jnp.dot(att_scr[...].astype(bf16), wout_ref[...],
                   preferred_element_type=f32) + bout_ref[...]      # (Tq, D)
    x1 = xq + attn

    # ---- MLP with QuickGELU (elementwise kept in f32) ----
    h2 = ln(x1, ln2g_ref, ln2b_ref)
    fc = jnp.dot(h2.astype(bf16), wfc_ref[...],
                 preferred_element_type=f32) + bfc_ref[...]         # (Tq, 4D)
    fc = fc * jax.nn.sigmoid(1.702 * fc)
    mlp = jnp.dot(fc.astype(bf16), wproj_ref[...],
                  preferred_element_type=f32) + bproj_ref[...]      # (Tq, D)
    o_ref[0] = x1 + mlp


# ----------------------------- wrapper ---------------------------------------

def residual_attention_block(x_sbd, params, *, n_heads, q_block=None, eps=1e-5):
    """x_sbd: (S, B, D) like torch nn.MultiheadAttention (batch_first=False).

    Returns (out (S, B, D), attn_weights (B, n_heads, S, S))."""
    S, B, D = x_sbd.shape
    assert D % n_heads == 0
    hd = D // n_heads
    Tq = S if q_block is None else q_block
    assert S % Tq == 0 and (Tq == S or Tq % 8 == 0)

    x = jnp.transpose(x_sbd, (1, 0, 2)).astype(jnp.float32)          # (B, S, D)

    # ---- derive kernel-layout weights from torch-style parameters ----
    scale = hd ** -0.5
    in_w, in_b = params["in_proj_weight"], params["in_proj_bias"]    # (3D, D), (3D,)
    wq_t = (in_w[:D].T * scale).astype(jnp.bfloat16)                 # (D, D), q-scale folded
    bq = (in_b[:D] * scale).reshape(1, D).astype(jnp.float32)
    wkv_t = in_w[D:].T.astype(jnp.bfloat16)                          # (D, 2D): [k | v]
    bkv = in_b[D:].reshape(1, 2 * D).astype(jnp.float32)
    wout_t = params["out_proj_weight"].T.astype(jnp.bfloat16)        # (D, D)
    bout = params["out_proj_bias"].reshape(1, D).astype(jnp.float32)
    wfc_t = params["c_fc_weight"].T.astype(jnp.bfloat16)             # (D, 4D)
    bfc = params["c_fc_bias"].reshape(1, -1).astype(jnp.float32)
    wproj_t = params["c_proj_weight"].T.astype(jnp.bfloat16)         # (4D, D)
    bproj = params["c_proj_bias"].reshape(1, D).astype(jnp.float32)
    ln1g = params["ln1_g"].reshape(1, D).astype(jnp.float32)
    ln1b = params["ln1_b"].reshape(1, D).astype(jnp.float32)
    ln2g = params["ln2_g"].reshape(1, D).astype(jnp.float32)
    ln2b = params["ln2_b"].reshape(1, D).astype(jnp.float32)
    Dh = wfc_t.shape[1]

    # ---- explicit VMEM budget (bf16 weights; pipeline double-buffers) ----
    def _nbytes(a):
        return int(a.size) * a.dtype.itemsize
    weight_bytes = sum(_nbytes(a) for a in (wq_t, wkv_t, wout_t, wfc_t, wproj_t,
                                            bq, bkv, bout, bfc, bproj,
                                            ln1g, ln1b, ln2g, ln2b))
    act_bytes = 4 * (Tq * D + S * D + Tq * D + n_heads * Tq * S)
    scratch_bytes = 4 * (n_heads * Tq * hd + 2 * n_heads * S * hd + Tq * D)
    est = 2 * (weight_bytes + act_bytes) + scratch_bytes
    vmem_limit = int(min(max(4 * est, 32 * 1024 * 1024), 100 * 1024 * 1024))

    def wspec(shape):
        return pl.BlockSpec(shape, lambda b, qi, _s=len(shape): (0,) * _s)

    out_x, attn_w = pl.pallas_call(
        functools.partial(_resblock_kernel, n_heads=n_heads, eps=eps),
        out_shape=(jax.ShapeDtypeStruct((B, S, D), jnp.float32),
                   jax.ShapeDtypeStruct((B, n_heads, S, S), jnp.float32)),
        grid=(B, S // Tq),
        in_specs=[
            pl.BlockSpec((1, Tq, D), lambda b, qi: (b, qi, 0)),   # query / residual tile
            pl.BlockSpec((1, S, D), lambda b, qi: (b, 0, 0)),     # full sequence (K/V)
            wspec((1, D)), wspec((1, D)),                          # ln_1
            wspec((D, D)), wspec((1, D)),                          # q proj (scaled)
            wspec((D, 2 * D)), wspec((1, 2 * D)),                  # kv proj
            wspec((D, D)), wspec((1, D)),                          # out proj
            wspec((1, D)), wspec((1, D)),                          # ln_2
            wspec((D, Dh)), wspec((1, Dh)),                        # c_fc
            wspec((Dh, D)), wspec((1, D)),                         # c_proj
        ],
        out_specs=(pl.BlockSpec((1, Tq, D), lambda b, qi: (b, qi, 0)),
                   pl.BlockSpec((1, n_heads, Tq, S), lambda b, qi: (b, 0, qi, 0))),
        scratch_shapes=[
            pltpu.VMEM((n_heads, Tq, hd), jnp.float32),   # q per head
            pltpu.VMEM((n_heads, S, hd), jnp.float32),    # k per head
            pltpu.VMEM((n_heads, S, hd), jnp.float32),    # v per head
            pltpu.VMEM((Tq, D), jnp.float32),             # packed attention context
        ],
        compiler_params=pltpu.CompilerParams(
            dimension_semantics=("parallel", "parallel"),
            vmem_limit_bytes=vmem_limit),
    )(x, x, ln1g, ln1b, wq_t, bq, wkv_t, bkv, wout_t, bout,
      ln2g, ln2b, wfc_t, bfc, wproj_t, bproj)

    return jnp.transpose(out_x, (1, 0, 2)), attn_w


# ----------------------------- pure-JAX reference ----------------------------

def reference_block(x_sbd, params, *, n_heads, eps=1e-5):
    S, B, D = x_sbd.shape
    hd = D // n_heads
    x = jnp.transpose(x_sbd, (1, 0, 2))                               # (B, S, D)

    def ln(v, g, b):
        m = jnp.mean(v, -1, keepdims=True)
        var = jnp.mean((v - m) ** 2, -1, keepdims=True)
        return (v - m) / jnp.sqrt(var + eps) * g + b

    h = ln(x, params["ln1_g"], params["ln1_b"])
    qkv = h @ params["in_proj_weight"].T + params["in_proj_bias"]
    q, k, v = jnp.split(qkv, 3, axis=-1)
    q = q * (hd ** -0.5)
    qh = q.reshape(B, S, n_heads, hd).transpose(0, 2, 1, 3)
    kh = k.reshape(B, S, n_heads, hd).transpose(0, 2, 1, 3)
    vh = v.reshape(B, S, n_heads, hd).transpose(0, 2, 1, 3)
    w = jax.nn.softmax(qh @ kh.transpose(0, 1, 3, 2), axis=-1)        # (B, H, S, S)
    o = (w @ vh).transpose(0, 2, 1, 3).reshape(B, S, D)
    x = x + (o @ params["out_proj_weight"].T + params["out_proj_bias"])
    h2 = ln(x, params["ln2_g"], params["ln2_b"])
    fc = h2 @ params["c_fc_weight"].T + params["c_fc_bias"]
    fc = fc * jax.nn.sigmoid(1.702 * fc)
    x = x + (fc @ params["c_proj_weight"].T + params["c_proj_bias"])
    return jnp.transpose(x, (1, 0, 2)), w


# ----------------------------- param init ------------------------------------

def init_params(key, d_model):
    Dh = 4 * d_model
    ks = jax.random.split(key, 8)

    def rnd(k, shape, s=0.02):
        return (s * jax.random.normal(k, shape)).astype(jnp.float32)

    return dict(
        ln1_g=jnp.ones((d_model,), jnp.float32), ln1_b=jnp.zeros((d_model,), jnp.float32),
        in_proj_weight=rnd(ks[0], (3 * d_model, d_model)),
        in_proj_bias=rnd(ks[1], (3 * d_model,)),
        out_proj_weight=rnd(ks[2], (d_model, d_model)),
        out_proj_bias=rnd(ks[3], (d_model,)),
        ln2_g=jnp.ones((d_model,), jnp.float32), ln2_b=jnp.zeros((d_model,), jnp.float32),
        c_fc_weight=rnd(ks[4], (Dh, d_model)),
        c_fc_bias=rnd(ks[5], (Dh,)),
        c_proj_weight=rnd(ks[6], (d_model, Dh)),
        c_proj_bias=rnd(ks[7], (d_model,)),
    )


# ----------------------------- main -------------------------------------------

if __name__ == "__main__":
    key = jax.random.PRNGKey(0)
    kp, kx = jax.random.split(key)

    # small, lane-friendly config: seq multiple of 8, width multiple of 128
    S, B, D, HEADS = 16, 2, 128, 4
    params = init_params(kp, D)
    x = jax.random.normal(kx, (S, B, D), dtype=jnp.float32)   # (S, B, D) like torch MHA

    out, attn_w = residual_attention_block(x, params, n_heads=HEADS, q_block=8)
    jax.block_until_ready((out, attn_w))

    ref_out, ref_w = reference_block(x, params, n_heads=HEADS)
    assert out.shape == (S, B, D)
    assert attn_w.shape == (B, HEADS, S, S)
    # bf16 matmul operands (f32 accumulation) => loosen tolerance vs f32 reference
    assert jnp.allclose(out, ref_out, atol=2e-2, rtol=2e-2), \
        float(jnp.max(jnp.abs(out - ref_out)))
    assert jnp.allclose(attn_w, ref_w, atol=2e-2, rtol=2e-2), \
        float(jnp.max(jnp.abs(attn_w - ref_w)))

    print("KERNEL_OK")
</pallas_src>

<mosaic_0001>
module attributes {stable_mosaic.version = 11 : i64} {
  func.func @_resblock_kernel(%arg0: i32, %arg1: i32, %arg2: memref<1x8x128xf32, #tpu.memory_space<vmem>>, %arg3: memref<1x16x128xf32, #tpu.memory_space<vmem>>, %arg4: memref<1x128xf32, #tpu.memory_space<vmem>>, %arg5: memref<1x128xf32, #tpu.memory_space<vmem>>, %arg6: memref<128x128xbf16, #tpu.memory_space<vmem>>, %arg7: memref<1x128xf32, #tpu.memory_space<vmem>>, %arg8: memref<128x256xbf16, #tpu.memory_space<vmem>>, %arg9: memref<1x256xf32, #tpu.memory_space<vmem>>, %arg10: memref<128x128xbf16, #tpu.memory_space<vmem>>, %arg11: memref<1x128xf32, #tpu.memory_space<vmem>>, %arg12: memref<1x128xf32, #tpu.memory_space<vmem>>, %arg13: memref<1x128xf32, #tpu.memory_space<vmem>>, %arg14: memref<128x512xbf16, #tpu.memory_space<vmem>>, %arg15: memref<1x512xf32, #tpu.memory_space<vmem>>, %arg16: memref<512x128xbf16, #tpu.memory_space<vmem>>, %arg17: memref<1x128xf32, #tpu.memory_space<vmem>>, %arg18: memref<1x8x128xf32, #tpu.memory_space<vmem>>, %arg19: memref<1x4x8x16xf32, #tpu.memory_space<vmem>>, %arg20: memref<4x8x32xf32, #tpu.memory_space<vmem>>, %arg21: memref<4x16x32xf32, #tpu.memory_space<vmem>>, %arg22: memref<4x16x32xf32, #tpu.memory_space<vmem>>, %arg23: memref<8x128xf32, #tpu.memory_space<vmem>>) attributes {dimension_semantics = [#tpu.dimension_semantics<parallel>, #tpu.dimension_semantics<parallel>], iteration_bounds = array<i64: 2, 2>, scalar_prefetch = 0 : i64, scratch_operands = 4 : i64, tpu.core_type = #tpu.core_type<tc>, window_params = [{transform_indices = @transform_0, window_bounds = array<i64: 1, 8, 128>}, {transform_indices = @transform_1, window_bounds = array<i64: 1, 16, 128>}, {pipeline_mode = #tpu.pipeline_mode<synchronous>, transform_indices = @transform_2, window_bounds = array<i64: 1, 128>}, {pipeline_mode = #tpu.pipeline_mode<synchronous>, transform_indices = @transform_3, window_bounds = array<i64: 1, 128>}, {pipeline_mode = #tpu.pipeline_mode<synchronous>, transform_indices = @transform_4, window_bounds = array<i64: 128, 128>}, {pipeline_mode = #tpu.pipeline_mode<synchronous>, transform_indices = @transform_5, window_bounds = array<i64: 1, 128>}, {pipeline_mode = #tpu.pipeline_mode<synchronous>, transform_indices = @transform_6, window_bounds = array<i64: 128, 256>}, {pipeline_mode = #tpu.pipeline_mode<synchronous>, transform_indices = @transform_7, window_bounds = array<i64: 1, 256>}, {pipeline_mode = #tpu.pipeline_mode<synchronous>, transform_indices = @transform_8, window_bounds = array<i64: 128, 128>}, {pipeline_mode = #tpu.pipeline_mode<synchronous>, transform_indices = @transform_9, window_bounds = array<i64: 1, 128>}, {pipeline_mode = #tpu.pipeline_mode<synchronous>, transform_indices = @transform_10, window_bounds = array<i64: 1, 128>}, {pipeline_mode = #tpu.pipeline_mode<synchronous>, transform_indices = @transform_11, window_bounds = array<i64: 1, 128>}, {pipeline_mode = #tpu.pipeline_mode<synchronous>, transform_indices = @transform_12, window_bounds = array<i64: 128, 512>}, {pipeline_mode = #tpu.pipeline_mode<synchronous>, transform_indices = @transform_13, window_bounds = array<i64: 1, 512>}, {pipeline_mode = #tpu.pipeline_mode<synchronous>, transform_indices = @transform_14, window_bounds = array<i64: 512, 128>}, {pipeline_mode = #tpu.pipeline_mode<synchronous>, transform_indices = @transform_15, window_bounds = array<i64: 1, 128>}, {transform_indices = @transform_16, window_bounds = array<i64: 1, 8, 128>}, {transform_indices = @transform_17, window_bounds = array<i64: 1, 4, 8, 16>}]} {
    %c0 = arith.constant 0 : index
    %c0_0 = arith.constant 0 : index
    %c0_1 = arith.constant 0 : index
    %0 = vector.load %arg2[%c0, %c0_0, %c0_1] : memref<1x8x128xf32, #tpu.memory_space<vmem>>, vector<1x8x128xf32>
    %1 = vector.shape_cast %0 : vector<1x8x128xf32> to vector<8x128xf32>
    %c0_2 = arith.constant 0 : index
    %c0_3 = arith.constant 0 : index
    %c0_4 = arith.constant 0 : index
    %2 = vector.load %arg3[%c0_2, %c0_3, %c0_4] : memref<1x16x128xf32, #tpu.memory_space<vmem>>, vector<1x16x128xf32>
    %3 = vector.shape_cast %2 : vector<1x16x128xf32> to vector<16x128xf32>
    %cst = arith.constant dense<0.000000e+00> : vector<8xf32>
    %4 = vector.multi_reduction <add>, %1, %cst [1] : vector<8x128xf32> to vector<8xf32>
    %5 = vector.shape_cast %4 : vector<8xf32> to vector<8x1xf32>
    %cst_5 = arith.constant 1.280000e+02 : f32
    %6 = vector.broadcast %cst_5 : f32 to vector<8x1xf32>
    %7 = arith.divf %5, %6 : vector<8x1xf32>
    %8 = vector.broadcast %7 : vector<8x1xf32> to vector<8x128xf32>
    %9 = arith.subf %1, %8 : vector<8x128xf32>
    %10 = arith.mulf %9, %9 : vector<8x128xf32>
    %cst_6 = arith.constant dense<0.000000e+00> : vector<8xf32>
    %11 = vector.multi_reduction <add>, %10, %cst_6 [1] : vector<8x128xf32> to vector<8xf32>
    %12 = vector.shape_cast %11 : vector<8xf32> to vector<8x1xf32>
    %cst_7 = arith.constant 1.280000e+02 : f32
    %13 = vector.broadcast %cst_7 : f32 to vector<8x1xf32>
    %14 = arith.divf %12, %13 : vector<8x1xf32>
    %cst_8 = arith.constant 9.99999974E-6 : f32
    %15 = vector.broadcast %cst_8 : f32 to vector<8x1xf32>
    %16 = arith.addf %14, %15 : vector<8x1xf32>
    %17 = math.rsqrt %16 : vector<8x1xf32>
    %18 = vector.broadcast %17 : vector<8x1xf32> to vector<8x128xf32>
    %19 = arith.mulf %9, %18 : vector<8x128xf32>
    %c0_9 = arith.constant 0 : index
    %c0_10 = arith.constant 0 : index
    %20 = vector.load %arg4[%c0_9, %c0_10] : memref<1x128xf32, #tpu.memory_space<vmem>>, vector<1x128xf32>
    %21 = vector.broadcast %20 : vector<1x128xf32> to vector<8x128xf32>
    %22 = arith.mulf %19, %21 : vector<8x128xf32>
    %c0_11 = arith.constant 0 : index
    %c0_12 = arith.constant 0 : index
    %23 = vector.load %arg5[%c0_11, %c0_12] : memref<1x128xf32, #tpu.memory_space<vmem>>, vector<1x128xf32>
    %24 = vector.broadcast %23 : vector<1x128xf32> to vector<8x128xf32>
    %25 = arith.addf %22, %24 : vector<8x128xf32>
    %cst_13 = arith.constant dense<0.000000e+00> : vector<16xf32>
    %26 = vector.multi_reduction <add>, %3, %cst_13 [1] : vector<16x128xf32> to vector<16xf32>
    %27 = vector.shape_cast %26 : vector<16xf32> to vector<16x1xf32>
    %cst_14 = arith.constant 1.280000e+02 : f32
    %28 = vector.broadcast %cst_14 : f32 to vector<16x1xf32>
    %29 = arith.divf %27, %28 : vector<16x1xf32>
    %30 = vector.broadcast %29 : vector<16x1xf32> to vector<16x128xf32>
    %31 = arith.subf %3, %30 : vector<16x128xf32>
    %32 = arith.mulf %31, %31 : vector<16x128xf32>
    %cst_15 = arith.constant dense<0.000000e+00> : vector<16xf32>
    %33 = vector.multi_reduction <add>, %32, %cst_15 [1] : vector<16x128xf32> to vector<16xf32>
    %34 = vector.shape_cast %33 : vector<16xf32> to vector<16x1xf32>
    %cst_16 = arith.constant 1.280000e+02 : f32
    %35 = vector.broadcast %cst_16 : f32 to vector<16x1xf32>
    %36 = arith.divf %34, %35 : vector<16x1xf32>
    %cst_17 = arith.constant 9.99999974E-6 : f32
    %37 = vector.broadcast %cst_17 : f32 to vector<16x1xf32>
    %38 = arith.addf %36, %37 : vector<16x1xf32>
    %39 = math.rsqrt %38 : vector<16x1xf32>
    %40 = vector.broadcast %39 : vector<16x1xf32> to vector<16x128xf32>
    %41 = arith.mulf %31, %40 : vector<16x128xf32>
    %c0_18 = arith.constant 0 : index
    %c0_19 = arith.constant 0 : index
    %42 = vector.load %arg4[%c0_18, %c0_19] : memref<1x128xf32, #tpu.memory_space<vmem>>, vector<1x128xf32>
    %43 = vector.broadcast %42 : vector<1x128xf32> to vector<16x128xf32>
    %44 = arith.mulf %41, %43 : vector<16x128xf32>
    %c0_20 = arith.constant 0 : index
    %c0_21 = arith.constant 0 : index
    %45 = vector.load %arg5[%c0_20, %c0_21] : memref<1x128xf32, #tpu.memory_space<vmem>>, vector<1x128xf32>
    %46 = vector.broadcast %45 : vector<1x128xf32> to vector<16x128xf32>
    %47 = arith.addf %44, %46 : vector<16x128xf32>
    %48 = arith.truncf %25 : vector<8x128xf32> to vector<8x128xbf16>
    %c0_22 = arith.constant 0 : index
    %c0_23 = arith.constant 0 : index
    %49 = vector.load %arg6[%c0_22, %c0_23] : memref<128x128xbf16, #tpu.memory_space<vmem>>, vector<128x128xbf16>
    %cst_24 = arith.constant dense<0.000000e+00> : vector<8x128xf32>
    %50 = tpu.matmul %48, %49, %cst_24 {dimension_numbers = #tpu.dot_dimension_numbers<[1], [0], [0], [1], [0, 0, 1, 1], [], []>} : vector<8x128xbf16>, vector<128x128xbf16>, vector<8x128xf32> -> vector<8x128xf32>
    %c0_25 = arith.constant 0 : index
    %c0_26 = arith.constant 0 : index
    %51 = vector.load %arg7[%c0_25, %c0_26] : memref<1x128xf32, #tpu.memory_space<vmem>>, vector<1x128xf32>
    %52 = vector.broadcast %51 : vector<1x128xf32> to vector<8x128xf32>
    %53 = arith.addf %50, %52 : vector<8x128xf32>
    %54 = arith.truncf %47 : vector<16x128xf32> to vector<16x128xbf16>
    %c0_27 = arith.constant 0 : index
    %c0_28 = arith.constant 0 : index
    %55 = vector.load %arg8[%c0_27, %c0_28] : memref<128x256xbf16, #tpu.memory_space<vmem>>, vector<128x256xbf16>
    %cst_29 = arith.constant dense<0.000000e+00> : vector<16x256xf32>
    %56 = tpu.matmul %54, %55, %cst_29 {dimension_numbers = #tpu.dot_dimension_numbers<[1], [0], [0], [1], [0, 0, 1, 1], [], []>} : vector<16x128xbf16>, vector<128x256xbf16>, vector<16x256xf32> -> vector<16x256xf32>
    %c0_30 = arith.constant 0 : index
    %c0_31 = arith.constant 0 : index
    %57 = vector.load %arg9[%c0_30, %c0_31] : memref<1x256xf32, #tpu.memory_space<vmem>>, vector<1x256xf32>
    %58 = vector.broadcast %57 : vector<1x256xf32> to vector<16x256xf32>
    %59 = arith.addf %56, %58 : vector<16x256xf32>
    %60 = vector.extract_strided_slice %53 {offsets = [0, 0], sizes = [8, 32], strides = [1, 1]} : vector<8x128xf32> to vector<8x32xf32>
    %c0_32 = arith.constant 0 : index
    %c0_33 = arith.constant 0 : index
    %c0_34 = arith.constant 0 : index
    %61 = vector.load %arg20[%c0_32, %c0_33, %c0_34] : memref<4x8x32xf32, #tpu.memory_space<vmem>>, vector<1x8x32xf32>
    %62 = vector.shape_cast %61 : vector<1x8x32xf32> to vector<8x32xf32>
    %63 = vector.shape_cast %60 : vector<8x32xf32> to vector<1x8x32xf32>
    tpu.vector_store %arg20[%c0_32, %c0_33, %c0_34], %63 {strides = array<i32>} : memref<4x8x32xf32, #tpu.memory_space<vmem>>, vector<1x8x32xf32>,
    %64 = vector.extract_strided_slice %59 {offsets = [0, 0], sizes = [16, 32], strides = [1, 1]} : vector<16x256xf32> to vector<16x32xf32>
    %c0_35 = arith.constant 0 : index
    %c0_36 = arith.constant 0 : index
    %c0_37 = arith.constant 0 : index
    %65 = vector.load %arg21[%c0_35, %c0_36, %c0_37] : memref<4x16x32xf32, #tpu.memory_space<vmem>>, vector<1x16x32xf32>
    %66 = vector.shape_cast %65 : vector<1x16x32xf32> to vector<16x32xf32>
    %67 = vector.shape_cast %64 : vector<16x32xf32> to vector<1x16x32xf32>
    tpu.vector_store %arg21[%c0_35, %c0_36, %c0_37], %67 {strides = array<i32>} : memref<4x16x32xf32, #tpu.memory_space<vmem>>, vector<1x16x32xf32>,
    %68 = vector.extract_strided_slice %59 {offsets = [0, 128], sizes = [16, 32], strides = [1, 1]} : vector<16x256xf32> to vector<16x32xf32>
    %c0_38 = arith.constant 0 : index
    %c0_39 = arith.constant 0 : index
    %c0_40 = arith.constant 0 : index
    %69 = vector.load %arg22[%c0_38, %c0_39, %c0_40] : memref<4x16x32xf32, #tpu.memory_space<vmem>>, vector<1x16x32xf32>
    %70 = vector.shape_cast %69 : vector<1x16x32xf32> to vector<16x32xf32>
    %71 = vector.shape_cast %68 : vector<16x32xf32> to vector<1x16x32xf32>
    tpu.vector_store %arg22[%c0_38, %c0_39, %c0_40], %71 {strides = array<i32>} : memref<4x16x32xf32, #tpu.memory_space<vmem>>, vector<1x16x32xf32>,
    %72 = vector.extract_strided_slice %53 {offsets = [0, 32], sizes = [8, 32], strides = [1, 1]} : vector<8x128xf32> to vector<8x32xf32>
    %c1 = arith.constant 1 : index
    %c0_41 = arith.constant 0 : index
    %c0_42 = arith.constant 0 : index
    %73 = vector.load %arg20[%c1, %c0_41, %c0_42] : memref<4x8x32xf32, #tpu.memory_space<vmem>>, vector<1x8x32xf32>
    %74 = vector.shape_cast %73 : vector<1x8x32xf32> to vector<8x32xf32>
    %75 = vector.shape_cast %72 : vector<8x32xf32> to vector<1x8x32xf32>
    tpu.vector_store %arg20[%c1, %c0_41, %c0_42], %75 {strides = array<i32>} : memref<4x8x32xf32, #tpu.memory_space<vmem>>, vector<1x8x32xf32>,
    %76 = vector.extract_strided_slice %59 {offsets = [0, 32], sizes = [16, 32], strides = [1, 1]} : vector<16x256xf32> to vector<16x32xf32>
    %c1_43 = arith.constant 1 : index
    %c0_44 = arith.constant 0 : index
    %c0_45 = arith.constant 0 : index
    %77 = vector.load %arg21[%c1_43, %c0_44, %c0_45] : memref<4x16x32xf32, #tpu.memory_space<vmem>>, vector<1x16x32xf32>
    %78 = vector.shape_cast %77 : vector<1x16x32xf32> to vector<16x32xf32>
    %79 = vector.shape_cast %76 : vector<16x32xf32> to vector<1x16x32xf32>
    tpu.vector_store %arg21[%c1_43, %c0_44, %c0_45], %79 {strides = array<i32>} : memref<4x16x32xf32, #tpu.memory_space<vmem>>, vector<1x16x32xf32>,
    %80 = vector.extract_strided_slice %59 {offsets = [0, 160], sizes = [16, 32], strides = [1, 1]} : vector<16x256xf32> to vector<16x32xf32>
    %c1_46 = arith.constant 1 : index
    %c0_47 = arith.constant 0 : index
    %c0_48 = arith.constant 0 : index
    %81 = vector.load %arg22[%c1_46, %c0_47, %c0_48] : memref<4x16x32xf32, #tpu.memory_space<vmem>>, vector<1x16x32xf32>
    %82 = vector.shape_cast %81 : vector<1x16x32xf32> to vector<16x32xf32>
    %83 = vector.shape_cast %80 : vector<16x32xf32> to vector<1x16x32xf32>
    tpu.vector_store %arg22[%c1_46, %c0_47, %c0_48], %83 {strides = array<i32>} : memref<4x16x32xf32, #tpu.memory_space<vmem>>, vector<1x16x32xf32>,
    %84 = vector.extract_strided_slice %53 {offsets = [0, 64], sizes = [8, 32], strides = [1, 1]} : vector<8x128xf32> to vector<8x32xf32>
    %c2 = arith.constant 2 : index
    %c0_49 = arith.constant 0 : index
    %c0_50 = arith.constant 0 : index
    %85 = vector.load %arg20[%c2, %c0_49, %c0_50] : memref<4x8x32xf32, #tpu.memory_space<vmem>>, vector<1x8x32xf32>
    %86 = vector.shape_cast %85 : vector<1x8x32xf32> to vector<8x32xf32>
    %87 = vector.shape_cast %84 : vector<8x32xf32> to vector<1x8x32xf32>
    tpu.vector_store %arg20[%c2, %c0_49, %c0_50], %87 {strides = array<i32>} : memref<4x8x32xf32, #tpu.memory_space<vmem>>, vector<1x8x32xf32>,
    %88 = vector.extract_strided_slice %59 {offsets = [0, 64], sizes = [16, 32], strides = [1, 1]} : vector<16x256xf32> to vector<16x32xf32>
    %c2_51 = arith.constant 2 : index
    %c0_52 = arith.constant 0 : index
    %c0_53 = arith.constant 0 : index
    %89 = vector.load %arg21[%c2_51, %c0_52, %c0_53] : memref<4x16x32xf32, #tpu.memory_space<vmem>>, vector<1x16x32xf32>
    %90 = vector.shape_cast %89 : vector<1x16x32xf32> to vector<16x32xf32>
    %91 = vector.shape_cast %88 : vector<16x32xf32> to vector<1x16x32xf32>
    tpu.vector_store %arg21[%c2_51, %c0_52, %c0_53], %91 {strides = array<i32>} : memref<4x16x32xf32, #tpu.memory_space<vmem>>, vector<1x16x32xf32>,
    %92 = vector.extract_strided_slice %59 {offsets = [0, 192], sizes = [16, 32], strides = [1, 1]} : vector<16x256xf32> to vector<16x32xf32>
    %c2_54 = arith.constant 2 : index
    %c0_55 = arith.constant 0 : index
    %c0_56 = arith.constant 0 : index
    %93 = vector.load %arg22[%c2_54, %c0_55, %c0_56] : memref<4x16x32xf32, #tpu.memory_space<vmem>>, vector<1x16x32xf32>
    %94 = vector.shape_cast %93 : vector<1x16x32xf32> to vector<16x32xf32>
    %95 = vector.shape_cast %92 : vector<16x32xf32> to vector<1x16x32xf32>
    tpu.vector_store %arg22[%c2_54, %c0_55, %c0_56], %95 {strides = array<i32>} : memref<4x16x32xf32, #tpu.memory_space<vmem>>, vector<1x16x32xf32>,
    %96 = vector.extract_strided_slice %53 {offsets = [0, 96], sizes = [8, 32], strides = [1, 1]} : vector<8x128xf32> to vector<8x32xf32>
    %c3 = arith.constant 3 : index
    %c0_57 = arith.constant 0 : index
    %c0_58 = arith.constant 0 : index
    %97 = vector.load %arg20[%c3, %c0_57, %c0_58] : memref<4x8x32xf32, #tpu.memory_space<vmem>>, vector<1x8x32xf32>
    %98 = vector.shape_cast %97 : vector<1x8x32xf32> to vector<8x32xf32>
    %99 = vector.shape_cast %96 : vector<8x32xf32> to vector<1x8x32xf32>
    tpu.vector_store %arg20[%c3, %c0_57, %c0_58], %99 {strides = array<i32>} : memref<4x8x32xf32, #tpu.memory_space<vmem>>, vector<1x8x32xf32>,
    %100 = vector.extract_strided_slice %59 {offsets = [0, 96], sizes = [16, 32], strides = [1, 1]} : vector<16x256xf32> to vector<16x32xf32>
    %c3_59 = arith.constant 3 : index
    %c0_60 = arith.constant 0 : index
    %c0_61 = arith.constant 0 : index
    %101 = vector.load %arg21[%c3_59, %c0_60, %c0_61] : memref<4x16x32xf32, #tpu.memory_space<vmem>>, vector<1x16x32xf32>
    %102 = vector.shape_cast %101 : vector<1x16x32xf32> to vector<16x32xf32>
    %103 = vector.shape_cast %100 : vector<16x32xf32> to vector<1x16x32xf32>
    tpu.vector_store %arg21[%c3_59, %c0_60, %c0_61], %103 {strides = array<i32>} : memref<4x16x32xf32, #tpu.memory_space<vmem>>, vector<1x16x32xf32>,
    %104 = vector.extract_strided_slice %59 {offsets = [0, 224], sizes = [16, 32], strides = [1, 1]} : vector<16x256xf32> to vector<16x32xf32>
    %c3_62 = arith.constant 3 : index
    %c0_63 = arith.constant 0 : index
    %c0_64 = arith.constant 0 : index
    %105 = vector.load %arg22[%c3_62, %c0_63, %c0_64] : memref<4x16x32xf32, #tpu.memory_space<vmem>>, vector<1x16x32xf32>
    %106 = vector.shape_cast %105 : vector<1x16x32xf32> to vector<16x32xf32>
    %107 = vector.shape_cast %104 : vector<16x32xf32> to vector<1x16x32xf32>
    tpu.vector_store %arg22[%c3_62, %c0_63, %c0_64], %107 {strides = array<i32>} : memref<4x16x32xf32, #tpu.memory_space<vmem>>, vector<1x16x32xf32>,
    %c0_65 = arith.constant 0 : index
    %c0_66 = arith.constant 0 : index
    %c0_67 = arith.constant 0 : index
    %108 = vector.load %arg20[%c0_65, %c0_66, %c0_67] : memref<4x8x32xf32, #tpu.memory_space<vmem>>, vector<4x8x32xf32>
    %109 = arith.truncf %108 : vector<4x8x32xf32> to vector<4x8x32xbf16>
    %c0_68 = arith.constant 0 : index
    %c0_69 = arith.constant 0 : index
    %c0_70 = arith.constant 0 : index
    %110 = vector.load %arg21[%c0_68, %c0_69, %c0_70] : memref<4x16x32xf32, #tpu.memory_space<vmem>>, vector<4x16x32xf32>
    %111 = arith.truncf %110 : vector<4x16x32xf32> to vector<4x16x32xbf16>
    %c0_71 = arith.constant 0 : index
    %c0_72 = arith.constant 0 : index
    %c0_73 = arith.constant 0 : index
    %112 = vector.load %arg22[%c0_71, %c0_72, %c0_73] : memref<4x16x32xf32, #tpu.memory_space<vmem>>, vector<4x16x32xf32>
    %113 = arith.truncf %112 : vector<4x16x32xf32> to vector<4x16x32xbf16>
    "tpu.trace_start"() <{level = 10 : i32, message = "hqd,hkd->hqk"}> : () -> ()
    %cst_74 = arith.constant dense<0.000000e+00> : vector<4x8x16xf32>
    %114 = tpu.matmul %109, %111, %cst_74 {dimension_numbers = #tpu.dot_dimension_numbers<[2], [2], [1], [1], [0, 0, 0, 1, 1, 1], [0], [0]>} : vector<4x8x32xbf16>, vector<4x16x32xbf16>, vector<4x8x16xf32> -> vector<4x8x16xf32>
    "tpu.trace_stop"() : () -> ()
    %cst_75 = arith.constant dense<0xFF800000> : vector<4x8xf32>
    %115 = vector.multi_reduction <maximumf>, %114, %cst_75 [2] : vector<4x8x16xf32> to vector<4x8xf32>
    %116 = vector.shape_cast %115 : vector<4x8xf32> to vector<4x8x1xf32>
    %117 = vector.broadcast %116 : vector<4x8x1xf32> to vector<4x8x16xf32>
    %118 = arith.subf %114, %117 : vector<4x8x16xf32>
    %119 = math.exp %118 : vector<4x8x16xf32>
    %cst_76 = arith.constant dense<0.000000e+00> : vector<4x8xf32>
    %120 = vector.multi_reduction <add>, %119, %cst_76 [2] : vector<4x8x16xf32> to vector<4x8xf32>
    %121 = vector.shape_cast %120 : vector<4x8xf32> to vector<4x8x1xf32>
    %122 = tpu.reciprocal %121 {approx = true} : vector<4x8x1xf32> -> vector<4x8x1xf32>
    %123 = vector.broadcast %122 : vector<4x8x1xf32> to vector<4x8x16xf32>
    %124 = arith.mulf %119, %123 : vector<4x8x16xf32>
    %c0_77 = arith.constant 0 : index
    %c0_78 = arith.constant 0 : index
    %c0_79 = arith.constant 0 : index
    %c0_80 = arith.constant 0 : index
    %125 = vector.load %arg19[%c0_77, %c0_78, %c0_79, %c0_80] : memref<1x4x8x16xf32, #tpu.memory_space<vmem>>, vector<1x4x8x16xf32>
    %126 = vector.shape_cast %125 : vector<1x4x8x16xf32> to vector<4x8x16xf32>
    %127 = vector.shape_cast %124 : vector<4x8x16xf32> to vector<1x4x8x16xf32>
    tpu.vector_store %arg19[%c0_77, %c0_78, %c0_79, %c0_80], %127 {strides = array<i32>} : memref<1x4x8x16xf32, #tpu.memory_space<vmem>>, vector<1x4x8x16xf32>,
    %128 = arith.truncf %124 : vector<4x8x16xf32> to vector<4x8x16xbf16>
    "tpu.trace_start"() <{level = 10 : i32, message = "hqk,hkd->hqd"}> : () -> ()
    %cst_81 = arith.constant dense<0.000000e+00> : vector<4x8x32xf32>
    %129 = tpu.matmul %128, %113, %cst_81 {dimension_numbers = #tpu.dot_dimension_numbers<[2], [1], [1], [2], [0, 0, 0, 1, 1, 2], [0], [0]>} : vector<4x8x16xbf16>, vector<4x16x32xbf16>, vector<4x8x32xf32> -> vector<4x8x32xf32>
    "tpu.trace_stop"() : () -> ()
    %130 = vector.extract_strided_slice %129 {offsets = [0, 0, 0], sizes = [1, 8, 32], strides = [1, 1, 1]} : vector<4x8x32xf32> to vector<1x8x32xf32>
    %131 = vector.shape_cast %130 : vector<1x8x32xf32> to vector<8x32xf32>
    %c0_82 = arith.constant 0 : index
    %c0_83 = arith.constant 0 : index
    %132 = vector.load %arg23[%c0_82, %c0_83] : memref<8x128xf32, #tpu.memory_space<vmem>>, vector<8x32xf32>
    tpu.vector_store %arg23[%c0_82, %c0_83], %131 {strides = array<i32>} : memref<8x128xf32, #tpu.memory_space<vmem>>, vector<8x32xf32>,
    %133 = vector.extract_strided_slice %129 {offsets = [1, 0, 0], sizes = [1, 8, 32], strides = [1, 1, 1]} : vector<4x8x32xf32> to vector<1x8x32xf32>
    %134 = vector.shape_cast %133 : vector<1x8x32xf32> to vector<8x32xf32>
    %c0_84 = arith.constant 0 : index
    %c32 = arith.constant 32 : index
    %135 = vector.load %arg23[%c0_84, %c32] : memref<8x128xf32, #tpu.memory_space<vmem>>, vector<8x32xf32>
    tpu.vector_store %arg23[%c0_84, %c32], %134 {strides = array<i32>} : memref<8x128xf32, #tpu.memory_space<vmem>>, vector<8x32xf32>,
    %136 = vector.extract_strided_slice %129 {offsets = [2, 0, 0], sizes = [1, 8, 32], strides = [1, 1, 1]} : vector<4x8x32xf32> to vector<1x8x32xf32>
    %137 = vector.shape_cast %136 : vector<1x8x32xf32> to vector<8x32xf32>
    %c0_85 = arith.constant 0 : index
    %c64 = arith.constant 64 : index
    %138 = vector.load %arg23[%c0_85, %c64] : memref<8x128xf32, #tpu.memory_space<vmem>>, vector<8x32xf32>
    tpu.vector_store %arg23[%c0_85, %c64], %137 {strides = array<i32>} : memref<8x128xf32, #tpu.memory_space<vmem>>, vector<8x32xf32>,
    %139 = vector.extract_strided_slice %129 {offsets = [3, 0, 0], sizes = [1, 8, 32], strides = [1, 1, 1]} : vector<4x8x32xf32> to vector<1x8x32xf32>
    %140 = vector.shape_cast %139 : vector<1x8x32xf32> to vector<8x32xf32>
    %c0_86 = arith.constant 0 : index
    %c96 = arith.constant 96 : index
    %141 = vector.load %arg23[%c0_86, %c96] : memref<8x128xf32, #tpu.memory_space<vmem>>, vector<8x32xf32>
    tpu.vector_store %arg23[%c0_86, %c96], %140 {strides = array<i32>} : memref<8x128xf32, #tpu.memory_space<vmem>>, vector<8x32xf32>,
    %c0_87 = arith.constant 0 : index
    %c0_88 = arith.constant 0 : index
    %142 = vector.load %arg23[%c0_87, %c0_88] : memref<8x128xf32, #tpu.memory_space<vmem>>, vector<8x128xf32>
    %143 = arith.truncf %142 : vector<8x128xf32> to vector<8x128xbf16>
    %c0_89 = arith.constant 0 : index
    %c0_90 = arith.constant 0 : index
    %144 = vector.load %arg10[%c0_89, %c0_90] : memref<128x128xbf16, #tpu.memory_space<vmem>>, vector<128x128xbf16>
    %cst_91 = arith.constant dense<0.000000e+00> : vector<8x128xf32>
    %145 = tpu.matmul %143, %144, %cst_91 {dimension_numbers = #tpu.dot_dimension_numbers<[1], [0], [0], [1], [0, 0, 1, 1], [], []>} : vector<8x128xbf16>, vector<128x128xbf16>, vector<8x128xf32> -> vector<8x128xf32>
    %c0_92 = arith.constant 0 : index
    %c0_93 = arith.constant 0 : index
    %146 = vector.load %arg11[%c0_92, %c0_93] : memref<1x128xf32, #tpu.memory_space<vmem>>, vector<1x128xf32>
    %147 = vector.broadcast %146 : vector<1x128xf32> to vector<8x128xf32>
    %148 = arith.addf %145, %147 : vector<8x128xf32>
    %149 = arith.addf %1, %148 : vector<8x128xf32>
    %cst_94 = arith.constant dense<0.000000e+00> : vector<8xf32>
    %150 = vector.multi_reduction <add>, %149, %cst_94 [1] : vector<8x128xf32> to vector<8xf32>
    %151 = vector.shape_cast %150 : vector<8xf32> to vector<8x1xf32>
    %cst_95 = arith.constant 1.280000e+02 : f32
    %152 = vector.broadcast %cst_95 : f32 to vector<8x1xf32>
    %153 = arith.divf %151, %152 : vector<8x1xf32>
    %154 = vector.broadcast %153 : vector<8x1xf32> to vector<8x128xf32>
    %155 = arith.subf %149, %154 : vector<8x128xf32>
    %156 = arith.mulf %155, %155 : vector<8x128xf32>
    %cst_96 = arith.constant dense<0.000000e+00> : vector<8xf32>
    %157 = vector.multi_reduction <add>, %156, %cst_96 [1] : vector<8x128xf32> to vector<8xf32>
    %158 = vector.shape_cast %157 : vector<8xf32> to vector<8x1xf32>
    %cst_97 = arith.constant 1.280000e+02 : f32
    %159 = vector.broadcast %cst_97 : f32 to vector<8x1xf32>
    %160 = arith.divf %158, %159 : vector<8x1xf32>
    %cst_98 = arith.constant 9.99999974E-6 : f32
    %161 = vector.broadcast %cst_98 : f32 to vector<8x1xf32>
    %162 = arith.addf %160, %161 : vector<8x1xf32>
    %163 = math.rsqrt %162 : vector<8x1xf32>
    %164 = vector.broadcast %163 : vector<8x1xf32> to vector<8x128xf32>
    %165 = arith.mulf %155, %164 : vector<8x128xf32>
    %c0_99 = arith.constant 0 : index
    %c0_100 = arith.constant 0 : index
    %166 = vector.load %arg12[%c0_99, %c0_100] : memref<1x128xf32, #tpu.memory_space<vmem>>, vector<1x128xf32>
    %167 = vector.broadcast %166 : vector<1x128xf32> to vector<8x128xf32>
    %168 = arith.mulf %165, %167 : vector<8x128xf32>
    %c0_101 = arith.constant 0 : index
    %c0_102 = arith.constant 0 : index
    %169 = vector.load %arg13[%c0_101, %c0_102] : memref<1x128xf32, #tpu.memory_space<vmem>>, vector<1x128xf32>
    %170 = vector.broadcast %169 : vector<1x128xf32> to vector<8x128xf32>
    %171 = arith.addf %168, %170 : vector<8x128xf32>
    %172 = arith.truncf %171 : vector<8x128xf32> to vector<8x128xbf16>
    %c0_103 = arith.constant 0 : index
    %c0_104 = arith.constant 0 : index
    %173 = vector.load %arg14[%c0_103, %c0_104] : memref<128x512xbf16, #tpu.memory_space<vmem>>, vector<128x512xbf16>
    %cst_105 = arith.constant dense<0.000000e+00> : vector<8x512xf32>
    %174 = tpu.matmul %172, %173, %cst_105 {dimension_numbers = #tpu.dot_dimension_numbers<[1], [0], [0], [1], [0, 0, 1, 1], [], []>} : vector<8x128xbf16>, vector<128x512xbf16>, vector<8x512xf32> -> vector<8x512xf32>
    %c0_106 = arith.constant 0 : index
    %c0_107 = arith.constant 0 : index
    %175 = vector.load %arg15[%c0_106, %c0_107] : memref<1x512xf32, #tpu.memory_space<vmem>>, vector<1x512xf32>
    %176 = vector.broadcast %175 : vector<1x512xf32> to vector<8x512xf32>
    %177 = arith.addf %174, %176 : vector<8x512xf32>
    %cst_108 = arith.constant 1.702000e+00 : f32
    %178 = vector.broadcast %cst_108 : f32 to vector<8x512xf32>
    %179 = arith.mulf %178, %177 : vector<8x512xf32>
    %180 = arith.negf %179 : vector<8x512xf32>
    %181 = math.exp %180 : vector<8x512xf32>
    %cst_109 = arith.constant 1.000000e+00 : f32
    %182 = vector.broadcast %cst_109 : f32 to vector<8x512xf32>
    %183 = arith.addf %182, %181 : vector<8x512xf32>
    %184 = arith.divf %182, %183 : vector<8x512xf32>
    %185 = arith.mulf %177, %184 : vector<8x512xf32>
    %186 = arith.truncf %185 : vector<8x512xf32> to vector<8x512xbf16>
    %c0_110 = arith.constant 0 : index
    %c0_111 = arith.constant 0 : index
    %187 = vector.load %arg16[%c0_110, %c0_111] : memref<512x128xbf16, #tpu.memory_space<vmem>>, vector<512x128xbf16>
    %cst_112 = arith.constant dense<0.000000e+00> : vector<8x128xf32>
    %188 = tpu.matmul %186, %187, %cst_112 {dimension_numbers = #tpu.dot_dimension_numbers<[1], [0], [0], [1], [0, 0, 1, 1], [], []>} : vector<8x512xbf16>, vector<512x128xbf16>, vector<8x128xf32> -> vector<8x128xf32>
    %c0_113 = arith.constant 0 : index
    %c0_114 = arith.constant 0 : index
    %189 = vector.load %arg17[%c0_113, %c0_114] : memref<1x128xf32, #tpu.memory_space<vmem>>, vector<1x128xf32>
    %190 = vector.broadcast %189 : vector<1x128xf32> to vector<8x128xf32>
    %191 = arith.addf %188, %190 : vector<8x128xf32>
    %192 = arith.addf %149, %191 : vector<8x128xf32>
    %c0_115 = arith.constant 0 : index
    %c0_116 = arith.constant 0 : index
    %c0_117 = arith.constant 0 : index
    %193 = vector.load %arg18[%c0_115, %c0_116, %c0_117] : memref<1x8x128xf32, #tpu.memory_space<vmem>>, vector<1x8x128xf32>
    %194 = vector.shape_cast %193 : vector<1x8x128xf32> to vector<8x128xf32>
    %195 = vector.shape_cast %192 : vector<8x128xf32> to vector<1x8x128xf32>
    tpu.vector_store %arg18[%c0_115, %c0_116, %c0_117], %195 {strides = array<i32>} : memref<1x8x128xf32, #tpu.memory_space<vmem>>, vector<1x8x128xf32>,
    return
  }
  func.func @transform_0(%arg0: i32, %arg1: i32) -> (i32, i32, i32) {
    %c0_i32 = arith.constant 0 : i32
    %c0_i32_0 = arith.constant 0 : i32
    return %arg0, %arg1, %c0_i32 : i32, i32, i32
  }
  func.func @transform_1(%arg0: i32, %arg1: i32) -> (i32, i32, i32) {
    %c0_i32 = arith.constant 0 : i32
    %c0_i32_0 = arith.constant 0 : i32
    %c0_i32_1 = arith.constant 0 : i32
    return %arg0, %c0_i32, %c0_i32_0 : i32, i32, i32
  }
  func.func @transform_2(%arg0: i32, %arg1: i32) -> (i32, i32) {
    %c0_i32 = arith.constant 0 : i32
    %c0_i32_0 = arith.constant 0 : i32
    %c0_i32_1 = arith.constant 0 : i32
    return %c0_i32, %c0_i32_0 : i32, i32
  }
  func.func @transform_3(%arg0: i32, %arg1: i32) -> (i32, i32) {
    %c0_i32 = arith.constant 0 : i32
    %c0_i32_0 = arith.constant 0 : i32
    %c0_i32_1 = arith.constant 0 : i32
    return %c0_i32, %c0_i32_0 : i32, i32
  }
  func.func @transform_4(%arg0: i32, %arg1: i32) -> (i32, i32) {
    %c0_i32 = arith.constant 0 : i32
    %c0_i32_0 = arith.constant 0 : i32
    %c0_i32_1 = arith.constant 0 : i32
    return %c0_i32, %c0_i32_0 : i32, i32
  }
  func.func @transform_5(%arg0: i32, %arg1: i32) -> (i32, i32) {
    %c0_i32 = arith.constant 0 : i32
    %c0_i32_0 = arith.constant 0 : i32
    %c0_i32_1 = arith.constant 0 : i32
    return %c0_i32, %c0_i32_0 : i32, i32
  }
  func.func @transform_6(%arg0: i32, %arg1: i32) -> (i32, i32) {
    %c0_i32 = arith.constant 0 : i32
    %c0_i32_0 = arith.constant 0 : i32
    %c0_i32_1 = arith.constant 0 : i32
    return %c0_i32, %c0_i32_0 : i32, i32
  }
  func.func @transform_7(%arg0: i32, %arg1: i32) -> (i32, i32) {
    %c0_i32 = arith.constant 0 : i32
    %c0_i32_0 = arith.constant 0 : i32
    %c0_i32_1 = arith.constant 0 : i32
    return %c0_i32, %c0_i32_0 : i32, i32
  }
  func.func @transform_8(%arg0: i32, %arg1: i32) -> (i32, i32) {
    %c0_i32 = arith.constant 0 : i32
    %c0_i32_0 = arith.constant 0 : i32
    %c0_i32_1 = arith.constant 0 : i32
    return %c0_i32, %c0_i32_0 : i32, i32
  }
  func.func @transform_9(%arg0: i32, %arg1: i32) -> (i32, i32) {
    %c0_i32 = arith.constant 0 : i32
    %c0_i32_0 = arith.constant 0 : i32
    %c0_i32_1 = arith.constant 0 : i32
    return %c0_i32, %c0_i32_0 : i32, i32
  }
  func.func @transform_10(%arg0: i32, %arg1: i32) -> (i32, i32) {
    %c0_i32 = arith.constant 0 : i32
    %c0_i32_0 = arith.constant 0 : i32
    %c0_i32_1 = arith.constant 0 : i32
    return %c0_i32, %c0_i32_0 : i32, i32
  }
  func.func @transform_11(%arg0: i32, %arg1: i32) -> (i32, i32) {
    %c0_i32 = arith.constant 0 : i32
    %c0_i32_0 = arith.constant 0 : i32
    %c0_i32_1 = arith.constant 0 : i32
    return %c0_i32, %c0_i32_0 : i32, i32
  }
  func.func @transform_12(%arg0: i32, %arg1: i32) -> (i32, i32) {
    %c0_i32 = arith.constant 0 : i32
    %c0_i32_0 = arith.constant 0 : i32
    %c0_i32_1 = arith.constant 0 : i32
    return %c0_i32, %c0_i32_0 : i32, i32
  }
  func.func @transform_13(%arg0: i32, %arg1: i32) -> (i32, i32) {
    %c0_i32 = arith.constant 0 : i32
    %c0_i32_0 = arith.constant 0 : i32
    %c0_i32_1 = arith.constant 0 : i32
    return %c0_i32, %c0_i32_0 : i32, i32
  }
  func.func @transform_14(%arg0: i32, %arg1: i32) -> (i32, i32) {
    %c0_i32 = arith.constant 0 : i32
    %c0_i32_0 = arith.constant 0 : i32
    %c0_i32_1 = arith.constant 0 : i32
    return %c0_i32, %c0_i32_0 : i32, i32
  }
  func.func @transform_15(%arg0: i32, %arg1: i32) -> (i32, i32) {
    %c0_i32 = arith.constant 0 : i32
    %c0_i32_0 = arith.constant 0 : i32
    %c0_i32_1 = arith.constant 0 : i32
    return %c0_i32, %c0_i32_0 : i32, i32
  }
  func.func @transform_16(%arg0: i32, %arg1: i32) -> (i32, i32, i32) {
    %c0_i32 = arith.constant 0 : i32
    %c0_i32_0 = arith.constant 0 : i32
    return %arg0, %arg1, %c0_i32 : i32, i32, i32
  }
  func.func @transform_17(%arg0: i32, %arg1: i32) -> (i32, i32, i32, i32) {
    %c0_i32 = arith.constant 0 : i32
    %c0_i32_0 = arith.constant 0 : i32
    %c0_i32_1 = arith.constant 0 : i32
    return %arg0, %c0_i32, %arg1, %c0_i32_0 : i32, i32, i32, i32
  }
}

</mosaic_0001>

<llo_original>
// kernel: tpu_custom_call.1
$region0: #{tpu_custom_call.1}
  #allocation0 [shape = 'u32[]', space=smem, size = 0x4, offset = 0x4, fixed_abs, tag = 'smem constant byte address 0x4 - core index']
  #allocation1 [shape = 'u32[72,128]{1,0:T(1,128)}', space=vmem, size = 0x9000, scoped, tag = 'internal scratch']
  #allocation2 [shape = 'f32[4,8,32]{2,1,0:T(8,128)}', space=vmem, size = 0x4000, scoped, tag = 'scratch operand']
  #allocation3 [shape = 'f32[4,16,32]{2,1,0:T(8,128)}', space=vmem, size = 0x8000, scoped, tag = 'scratch operand']
  #allocation4 [shape = 'f32[4,16,32]{2,1,0:T(8,128)}', space=vmem, size = 0x8000, scoped, tag = 'scratch operand']
  #allocation5 [shape = 'f32[8,128]{1,0:T(8,128)}', space=vmem, size = 0x1000, scoped, tag = 'scratch operand']
  %s0 = inlined_call_operand.hbm [shape: f32[2,16,128], index: 0, kind: input, shape index: {}]
  %s1 = inlined_call_operand.hbm [shape: f32[2,16,128], index: 1, kind: input, shape index: {}]
  %s2 = inlined_call_operand.vmem [shape: f32[1,128], index: 2, kind: input, shape index: {}]
  %s3 = inlined_call_operand.hbm [shape: f32[1,128], index: 3, kind: input, shape index: {}]
  %s4 = inlined_call_operand.hbm [shape: bf16[128,128], index: 4, kind: input, shape index: {}]
  %s5 = inlined_call_operand.hbm [shape: f32[1,128], index: 5, kind: input, shape index: {}]
  %s6 = inlined_call_operand.hbm [shape: bf16[128,256], index: 6, kind: input, shape index: {}]
  %s7 = inlined_call_operand.vmem [shape: f32[1,256], index: 7, kind: input, shape index: {}]
  %s8 = inlined_call_operand.hbm [shape: bf16[128,128], index: 8, kind: input, shape index: {}]
  %s9 = inlined_call_operand.vmem [shape: f32[1,128], index: 9, kind: input, shape index: {}]
  %s10 = inlined_call_operand.vmem [shape: f32[1,128], index: 10, kind: input, shape index: {}]
  %s11 = inlined_call_operand.vmem [shape: f32[1,128], index: 11, kind: input, shape index: {}]
  %s12 = inlined_call_operand.hbm [shape: bf16[128,512], index: 12, kind: input, shape index: {}]
  %s13 = inlined_call_operand.vmem [shape: f32[1,512], index: 13, kind: input, shape index: {}]
  %s14 = inlined_call_operand.hbm [shape: bf16[512,128], index: 14, kind: input, shape index: {}]
  %s15 = inlined_call_operand.vmem [shape: f32[1,128], index: 15, kind: input, shape index: {}]
  %s16 = inlined_call_operand.hbm [shape: f32[2,16,128], index: 16, kind: output, shape index: {0}]
  %s17 = inlined_call_operand.hbm [shape: f32[2,4,16,16], index: 17, kind: output, shape index: {1}]
  %18 = xla_tuple %s16, %s17
  %s19 = sld [smem:[#allocation0]]
  $region141: #{tpu_custom_call.1} parent=0
    _
  %s21 = ssub.s32 1, %s19
  %s22 = scalar_select 0, %s21, %s19
  $region1: #{tpu_custom_call.1} parent=0
    #allocation6 [shape = 'u8[8192]{0}', space=vmem, size = 0x2000, scoped, tag = 'input window, operand 0']
    #allocation7 [shape = 's32[2]{0}', space=sflag, size = 0x8, scoped, tag = 'scoped memory for tpu_custom_call.1']
    #allocation8 [shape = 's32[2]{0}', space=sflag, size = 0x8, scoped, tag = 'scoped memory for tpu_custom_call.1']
    #allocation9 [shape = 'u8[16384]{0}', space=vmem, size = 0x4000, scoped, tag = 'input window, operand 1']
    #allocation10 [shape = 's32[2]{0}', space=sflag, size = 0x8, scoped, tag = 'scoped memory for tpu_custom_call.1']
    #allocation11 [shape = 'u8[512]{0}', space=vmem, size = 0x400, scoped, tag = 'input window, operand 3, single buffered']
    #allocation12 [shape = 'u8[32768]{0}', space=vmem, size = 0x8000, scoped, tag = 'input window, operand 4, single buffered']
    #allocation13 [shape = 's32[1]{0}', space=sflag, size = 0x4, scoped, tag = 'scoped memory for tpu_custom_call.1']
    #allocation14 [shape = 'u8[512]{0}', space=vmem, size = 0x400, scoped, tag = 'input window, operand 5, single buffered']
    #allocation15 [shape = 'u8[65536]{0}', space=vmem, size = 0x10000, scoped, tag = 'input window, operand 6, single buffered']
    #allocation16 [shape = 's32[1]{0}', space=sflag, size = 0x4, scoped, tag = 'scoped memory for tpu_custom_call.1']
    #allocation17 [shape = 'u8[32768]{0}', space=vmem, size = 0x8000, scoped, tag = 'input window, operand 8, single buffered']
    #allocation18 [shape = 'u8[131072]{0}', space=vmem, size = 0x20000, scoped, tag = 'input window, operand 12, single buffered']
    #allocation19 [shape = 's32[1]{0}', space=sflag, size = 0x4, scoped, tag = 'scoped memory for tpu_custom_call.1']
    #allocation20 [shape = 'u8[131072]{0}', space=vmem, size = 0x20000, scoped, tag = 'input window, operand 14, single buffered']
    #allocation21 [shape = 'u8[8192]{0}', space=vmem, size = 0x2000, scoped, tag = 'output window, operand 0']
    #allocation22 [shape = 'u8[32768]{0}', space=vmem, size = 0x8000, scoped, tag = 'output window, operand 1']
    #allocation23 [shape = 's32[2]{0}', space=sflag, size = 0x8, scoped, tag = 'scoped memory for tpu_custom_call.1']
    %23 = vsyncpa [#allocation7], 0
    %s24 = scalar_lea.sflag [#allocation7], 1
    %25 = vsyncpa %s24, 0
    %26 = vsyncpa [#allocation10], 0
    %s27 = scalar_lea.sflag [#allocation10], 1
    %28 = vsyncpa %s27, 0
    %29 = vsyncpa [#allocation13], 0
    %30 = vsyncpa [#allocation16], 0
    %31 = vsyncpa [#allocation19], 0
    %32 = vsyncpa [#allocation8], 0
    %s33 = scalar_lea.sflag [#allocation8], 1
    %34 = vsyncpa %s33, 0
    %35 = vsyncpa [#allocation23], 0
    %s36 = scalar_lea.sflag [#allocation23], 1
    %37 = vsyncpa %s36, 0
    loop: start=0, step=1, limit=6
    $region2: #{tpu_custom_call.1} parent=1 // loop_pre_header
      _
    $region3: #{tpu_custom_call.1} parent=1 // loop_header
      %s39 = sphi 0, %s43
      %p40 = scmp.ge.s32.totalorder %s39, 6
      %s46 = sphi 0, %s58
      %s47 = sphi 0, %s54
      %s48 = sphi 0, %s46
      %s49 = sphi 0, %s47
      %s50 = sphi 0, %s48
      %s51 = sphi 0, %s49
      %s63 = sphi 0, %s65
      %s66 = sphi 0, %s63
      %s67 = sphi 0, %s66
      %s83 = sphi 0, %s67
      %s89 = sphi 0, %s91
      %s92 = sphi 0, %s89
      %s93 = sphi 0, %s92
      %s109 = sphi 0, %s93
      %s113 = sphi 0, %s113
      %s115 = sphi 0, %s113
      %s116 = sphi 0, %s115
      %s130 = sphi 0, %s116
      %s134 = sphi 0, %s134
      %s136 = sphi 0, %s134
      %s137 = sphi 0, %s136
      %s151 = sphi 0, %s137
      %s155 = sphi 0, %s155
      %s157 = sphi 0, %s155
      %s158 = sphi 0, %s157
      %s172 = sphi 0, %s158
      %s176 = sphi 0, %s176
      %s178 = sphi 0, %s176
      %s179 = sphi 0, %s178
      %s193 = sphi 0, %s179
      %s197 = sphi 0, %s197
      %s199 = sphi 0, %s197
      %s200 = sphi 0, %s199
      %s214 = sphi 0, %s200
      %s218 = sphi 0, %s218
      %s220 = sphi 0, %s218
      %s221 = sphi 0, %s220
      %s235 = sphi 0, %s221
      %s239 = sphi 0, %s239
      %s241 = sphi 0, %s239
      %s242 = sphi 0, %s241
      %s256 = sphi 0, %s242
      %s260 = sphi 0, %s260
      %s262 = sphi 0, %s260
      %s263 = sphi 0, %s262
      %s277 = sphi 0, %s263
      %s281 = sphi 0, %s281
      %s283 = sphi 0, %s281
      %s284 = sphi 0, %s283
      %s298 = sphi 0, %s284
      %s302 = sphi 0, %s302
      %s304 = sphi 0, %s302
      %s305 = sphi 0, %s304
      %s319 = sphi 0, %s305
      %s323 = sphi 0, %s323
      %s325 = sphi 0, %s323
      %s326 = sphi 0, %s325
      %s340 = sphi 0, %s326
      %s344 = sphi 0, %s344
      %s346 = sphi 0, %s344
      %s347 = sphi 0, %s346
      %s361 = sphi 0, %s347
      %s365 = sphi 0, %s365
      %s367 = sphi 0, %s365
      %s368 = sphi 0, %s367
      %s382 = sphi 0, %s368
      %s386 = sphi 0, %s386
      %s388 = sphi 0, %s386
      %s389 = sphi 0, %s388
      %s403 = sphi 0, %s389
      %s411 = sphi 0, %s413
      %s414 = sphi 0, %s411
      %s415 = sphi 0, %s414
      %s431 = sphi 0, %s415
      %s439 = sphi 0, %s441
      %s442 = sphi 0, %s439
      %s443 = sphi 0, %s442
      %s459 = sphi 0, %s443
    $region4: #{tpu_custom_call.1} parent=1 // loop_header_branch
      %42 = sbr.rel (%p40) target = $region8
    $region5: #{tpu_custom_call.1} parent=1 // loop_body
      %s44 = ssub.s32 %s39, 1
      %s45 = ssub.s32 %s39, 2
      %s52 = sadd.s32 1, %s47
      %p53 = scmp.ge.s32.totalorder %s52, 2
      %s54 = scalar_select %p53, 0, %s52
      %s55 = sadd.s32 1, %s46
      %s56 = scalar_select %p53, %s55, %s46
      %p57 = scmp.ge.s32.totalorder %s56, 2
      %s58 = scalar_select %p57, 0, %s56
      %s59 = ssub.s32 %s46, %s58
      %s60 = ssub.s32 %s47, %s54
      %s61 = sor.u32 %s59, %s60
      %p62 = scmp.eq.s32.totalorder %s61, 0
      %s64 = sadd.s32 %s63, 1
      %s65 = scalar_select %p62, %s63, %s64
      %p68 = pneg %p62
      %p69 = scmp.eq.s32.totalorder %s39, 3
      %p70 = por %p68, %p69
      %p71 = scmp.ne.s32.totalorder %s63, %s66
      %p72 = scmp.eq.s32.totalorder %s39, 0
      %p73 = por %p71, %p72
      %p74 = scmp.ne.s32.totalorder %s63, %s66
      %p75 = scmp.eq.s32.totalorder %s44, 3
      %p76 = por %p74, %p75
      %p77 = scmp.ne.s32.totalorder %s66, %s67
      %p78 = scmp.eq.s32.totalorder %s44, 0
      %p79 = por %p77, %p78
      %p80 = scmp.ne.s32.totalorder %s66, %s67
      %p81 = scmp.eq.s32.totalorder %s45, 3
      %p82 = por %p80, %p81
      %p84 = scmp.ne.s32.totalorder %s67, %s83
      %p85 = scmp.eq.s32.totalorder %s45, 0
      %p86 = por %p84, %p85
      %s87 = ssub.s32 %s46, %s58
      %p88 = scmp.eq.s32.totalorder %s87, 0
      %s90 = sadd.s32 %s89, 1
      %s91 = scalar_select %p88, %s89, %s90
      %p94 = pneg %p88
      %p95 = scmp.eq.s32.totalorder %s39, 3
      %p96 = por %p94, %p95
      %p97 = scmp.ne.s32.totalorder %s89, %s92
      %p98 = scmp.eq.s32.totalorder %s39, 0
      %p99 = por %p97, %p98
      %p100 = scmp.ne.s32.totalorder %s89, %s92
      %p101 = scmp.eq.s32.totalorder %s44, 3
      %p102 = por %p100, %p101
      %p103 = scmp.ne.s32.totalorder %s92, %s93
      %p104 = scmp.eq.s32.totalorder %s44, 0
      %p105 = por %p103, %p104
      %p106 = scmp.ne.s32.totalorder %s92, %s93
      %p107 = scmp.eq.s32.totalorder %s45, 3
      %p108 = por %p106, %p107
      %p110 = scmp.ne.s32.totalorder %s93, %s109
      %p111 = scmp.eq.s32.totalorder %s45, 0
      %p112 = por %p110, %p111
      %s114 = sadd.s32 %s113, 1
      %p117 = scmp.eq.s32.totalorder %s39, 3
      %p118 = scmp.ne.s32.totalorder %s113, %s115
      %p119 = scmp.eq.s32.totalorder %s39, 0
      %p120 = por %p118, %p119
      %p121 = scmp.ne.s32.totalorder %s113, %s115
      %p122 = scmp.eq.s32.totalorder %s44, 3
      %p123 = por %p121, %p122
      %p124 = scmp.ne.s32.totalorder %s115, %s116
      %p125 = scmp.eq.s32.totalorder %s44, 0
      %p126 = por %p124, %p125
      %p127 = scmp.ne.s32.totalorder %s115, %s116
      %p128 = scmp.eq.s32.totalorder %s45, 3
      %p129 = por %p127, %p128
      %p131 = scmp.ne.s32.totalorder %s116, %s130
      %p132 = scmp.eq.s32.totalorder %s45, 0
      %p133 = por %p131, %p132
      %s135 = sadd.s32 %s134, 1
      %p138 = scmp.eq.s32.totalorder %s39, 3
      %p139 = scmp.ne.s32.totalorder %s134, %s136
      %p140 = scmp.eq.s32.totalorder %s39, 0
      %p141 = por %p139, %p140
      %p142 = scmp.ne.s32.totalorder %s134, %s136
      %p143 = scmp.eq.s32.totalorder %s44, 3
      %p144 = por %p142, %p143
      %p145 = scmp.ne.s32.totalorder %s136, %s137
      %p146 = scmp.eq.s32.totalorder %s44, 0
      %p147 = por %p145, %p146
      %p148 = scmp.ne.s32.totalorder %s136, %s137
      %p149 = scmp.eq.s32.totalorder %s45, 3
      %p150 = por %p148, %p149
      %p152 = scmp.ne.s32.totalorder %s137, %s151
      %p153 = scmp.eq.s32.totalorder %s45, 0
      %p154 = por %p152, %p153
      %s156 = sadd.s32 %s155, 1
      %p159 = scmp.eq.s32.totalorder %s39, 3
      %p160 = scmp.ne.s32.totalorder %s155, %s157
      %p161 = scmp.eq.s32.totalorder %s39, 0
      %p162 = por %p160, %p161
      %p163 = scmp.ne.s32.totalorder %s155, %s157
      %p164 = scmp.eq.s32.totalorder %s44, 3
      %p165 = por %p163, %p164
      %p166 = scmp.ne.s32.totalorder %s157, %s158
      %p167 = scmp.eq.s32.totalorder %s44, 0
      %p168 = por %p166, %p167
      %p169 = scmp.ne.s32.totalorder %s157, %s158
      %p170 = scmp.eq.s32.totalorder %s45, 3
      %p171 = por %p169, %p170
      %p173 = scmp.ne.s32.totalorder %s158, %s172
      %p174 = scmp.eq.s32.totalorder %s45, 0
      %p175 = por %p173, %p174
      %s177 = sadd.s32 %s176, 1
      %p180 = scmp.eq.s32.totalorder %s39, 3
      %p181 = scmp.ne.s32.totalorder %s176, %s178
      %p182 = scmp.eq.s32.totalorder %s39, 0
      %p183 = por %p181, %p182
      %p184 = scmp.ne.s32.totalorder %s176, %s178
      %p185 = scmp.eq.s32.totalorder %s44, 3
      %p186 = por %p184, %p185
      %p187 = scmp.ne.s32.totalorder %s178, %s179
      %p188 = scmp.eq.s32.totalorder %s44, 0
      %p189 = por %p187, %p188
      %p190 = scmp.ne.s32.totalorder %s178, %s179
      %p191 = scmp.eq.s32.totalorder %s45, 3
      %p192 = por %p190, %p191
      %p194 = scmp.ne.s32.totalorder %s179, %s193
      %p195 = scmp.eq.s32.totalorder %s45, 0
      %p196 = por %p194, %p195
      %s198 = sadd.s32 %s197, 1
      %p201 = scmp.eq.s32.totalorder %s39, 3
      %p202 = scmp.ne.s32.totalorder %s197, %s199
      %p203 = scmp.eq.s32.totalorder %s39, 0
      %p204 = por %p202, %p203
      %p205 = scmp.ne.s32.totalorder %s197, %s199
      %p206 = scmp.eq.s32.totalorder %s44, 3
      %p207 = por %p205, %p206
      %p208 = scmp.ne.s32.totalorder %s199, %s200
      %p209 = scmp.eq.s32.totalorder %s44, 0
      %p210 = por %p208, %p209
      %p211 = scmp.ne.s32.totalorder %s199, %s200
      %p212 = scmp.eq.s32.totalorder %s45, 3
      %p213 = por %p211, %p212
      %p215 = scmp.ne.s32.totalorder %s200, %s214
      %p216 = scmp.eq.s32.totalorder %s45, 0
      %p217 = por %p215, %p216
      %s219 = sadd.s32 %s218, 1
      %p222 = scmp.eq.s32.totalorder %s39, 3
      %p223 = scmp.ne.s32.totalorder %s218, %s220
      %p224 = scmp.eq.s32.totalorder %s39, 0
      %p225 = por %p223, %p224
      %p226 = scmp.ne.s32.totalorder %s218, %s220
      %p227 = scmp.eq.s32.totalorder %s44, 3
      %p228 = por %p226, %p227
      %p229 = scmp.ne.s32.totalorder %s220, %s221
      %p230 = scmp.eq.s32.totalorder %s44, 0
      %p231 = por %p229, %p230
      %p232 = scmp.ne.s32.totalorder %s220, %s221
      %p233 = scmp.eq.s32.totalorder %s45, 3
      %p234 = por %p232, %p233
      %p236 = scmp.ne.s32.totalorder %s221, %s235
      %p237 = scmp.eq.s32.totalorder %s45, 0
      %p238 = por %p236, %p237
      %s240 = sadd.s32 %s239, 1
      %p243 = scmp.eq.s32.totalorder %s39, 3
      %p244 = scmp.ne.s32.totalorder %s239, %s241
      %p245 = scmp.eq.s32.totalorder %s39, 0
      %p246 = por %p244, %p245
      %p247 = scmp.ne.s32.totalorder %s239, %s241
      %p248 = scmp.eq.s32.totalorder %s44, 3
      %p249 = por %p247, %p248
      %p250 = scmp.ne.s32.totalorder %s241, %s242
      %p251 = scmp.eq.s32.totalorder %s44, 0
      %p252 = por %p250, %p251
      %p253 = scmp.ne.s32.totalorder %s241, %s242
      %p254 = scmp.eq.s32.totalorder %s45, 3
      %p255 = por %p253, %p254
      %p257 = scmp.ne.s32.totalorder %s242, %s256
      %p258 = scmp.eq.s32.totalorder %s45, 0
      %p259 = por %p257, %p258
      %s261 = sadd.s32 %s260, 1
      %p264 = scmp.eq.s32.totalorder %s39, 3
      %p265 = scmp.ne.s32.totalorder %s260, %s262
      %p266 = scmp.eq.s32.totalorder %s39, 0
      %p267 = por %p265, %p266
      %p268 = scmp.ne.s32.totalorder %s260, %s262
      %p269 = scmp.eq.s32.totalorder %s44, 3
      %p270 = por %p268, %p269
      %p271 = scmp.ne.s32.totalorder %s262, %s263
      %p272 = scmp.eq.s32.totalorder %s44, 0
      %p273 = por %p271, %p272
      %p274 = scmp.ne.s32.totalorder %s262, %s263
      %p275 = scmp.eq.s32.totalorder %s45, 3
      %p276 = por %p274, %p275
      %p278 = scmp.ne.s32.totalorder %s263, %s277
      %p279 = scmp.eq.s32.totalorder %s45, 0
      %p280 = por %p278, %p279
      %s282 = sadd.s32 %s281, 1
      %p285 = scmp.eq.s32.totalorder %s39, 3
      %p286 = scmp.ne.s32.totalorder %s281, %s283
      %p287 = scmp.eq.s32.totalorder %s39, 0
      %p288 = por %p286, %p287
      %p289 = scmp.ne.s32.totalorder %s281, %s283
      %p290 = scmp.eq.s32.totalorder %s44, 3
      %p291 = por %p289, %p290
      %p292 = scmp.ne.s32.totalorder %s283, %s284
      %p293 = scmp.eq.s32.totalorder %s44, 0
      %p294 = por %p292, %p293
      %p295 = scmp.ne.s32.totalorder %s283, %s284
      %p296 = scmp.eq.s32.totalorder %s45, 3
      %p297 = por %p295, %p296
      %p299 = scmp.ne.s32.totalorder %s284, %s298
      %p300 = scmp.eq.s32.totalorder %s45, 0
      %p301 = por %p299, %p300
      %s303 = sadd.s32 %s302, 1
      %p306 = scmp.eq.s32.totalorder %s39, 3
      %p307 = scmp.ne.s32.totalorder %s302, %s304
      %p308 = scmp.eq.s32.totalorder %s39, 0
      %p309 = por %p307, %p308
      %p310 = scmp.ne.s32.totalorder %s302, %s304
      %p311 = scmp.eq.s32.totalorder %s44, 3
      %p312 = por %p310, %p311
      %p313 = scmp.ne.s32.totalorder %s304, %s305
      %p314 = scmp.eq.s32.totalorder %s44, 0
      %p315 = por %p313, %p314
      %p316 = scmp.ne.s32.totalorder %s304, %s305
      %p317 = scmp.eq.s32.totalorder %s45, 3
      %p318 = por %p316, %p317
      %p320 = scmp.ne.s32.totalorder %s305, %s319
      %p321 = scmp.eq.s32.totalorder %s45, 0
      %p322 = por %p320, %p321
      %s324 = sadd.s32 %s323, 1
      %p327 = scmp.eq.s32.totalorder %s39, 3
      %p328 = scmp.ne.s32.totalorder %s323, %s325
      %p329 = scmp.eq.s32.totalorder %s39, 0
      %p330 = por %p328, %p329
      %p331 = scmp.ne.s32.totalorder %s323, %s325
      %p332 = scmp.eq.s32.totalorder %s44, 3
      %p333 = por %p331, %p332
      %p334 = scmp.ne.s32.totalorder %s325, %s326
      %p335 = scmp.eq.s32.totalorder %s44, 0
      %p336 = por %p334, %p335
      %p337 = scmp.ne.s32.totalorder %s325, %s326
      %p338 = scmp.eq.s32.totalorder %s45, 3
      %p339 = por %p337, %p338
      %p341 = scmp.ne.s32.totalorder %s326, %s340
      %p342 = scmp.eq.s32.totalorder %s45, 0
      %p343 = por %p341, %p342
      %s345 = sadd.s32 %s344, 1
      %p348 = scmp.eq.s32.totalorder %s39, 3
      %p349 = scmp.ne.s32.totalorder %s344, %s346
      %p350 = scmp.eq.s32.totalorder %s39, 0
      %p351 = por %p349, %p350
      %p352 = scmp.ne.s32.totalorder %s344, %s346
      %p353 = scmp.eq.s32.totalorder %s44, 3
      %p354 = por %p352, %p353
      %p355 = scmp.ne.s32.totalorder %s346, %s347
      %p356 = scmp.eq.s32.totalorder %s44, 0
      %p357 = por %p355, %p356
      %p358 = scmp.ne.s32.totalorder %s346, %s347
      %p359 = scmp.eq.s32.totalorder %s45, 3
      %p360 = por %p358, %p359
      %p362 = scmp.ne.s32.totalorder %s347, %s361
      %p363 = scmp.eq.s32.totalorder %s45, 0
      %p364 = por %p362, %p363
      %s366 = sadd.s32 %s365, 1
      %p369 = scmp.eq.s32.totalorder %s39, 3
      %p370 = scmp.ne.s32.totalorder %s365, %s367
      %p371 = scmp.eq.s32.totalorder %s39, 0
      %p372 = por %p370, %p371
      %p373 = scmp.ne.s32.totalorder %s365, %s367
      %p374 = scmp.eq.s32.totalorder %s44, 3
      %p375 = por %p373, %p374
      %p376 = scmp.ne.s32.totalorder %s367, %s368
      %p377 = scmp.eq.s32.totalorder %s44, 0
      %p378 = por %p376, %p377
      %p379 = scmp.ne.s32.totalorder %s367, %s368
      %p380 = scmp.eq.s32.totalorder %s45, 3
      %p381 = por %p379, %p380
      %p383 = scmp.ne.s32.totalorder %s368, %s382
      %p384 = scmp.eq.s32.totalorder %s45, 0
      %p385 = por %p383, %p384
      %s387 = sadd.s32 %s386, 1
      %p390 = scmp.eq.s32.totalorder %s39, 3
      %p391 = scmp.ne.s32.totalorder %s386, %s388
      %p392 = scmp.eq.s32.totalorder %s39, 0
      %p393 = por %p391, %p392
      %p394 = scmp.ne.s32.totalorder %s386, %s388
      %p395 = scmp.eq.s32.totalorder %s44, 3
      %p396 = por %p394, %p395
      %p397 = scmp.ne.s32.totalorder %s388, %s389
      %p398 = scmp.eq.s32.totalorder %s44, 0
      %p399 = por %p397, %p398
      %p400 = scmp.ne.s32.totalorder %s388, %s389
      %p401 = scmp.eq.s32.totalorder %s45, 3
      %p402 = por %p400, %p401
      %p404 = scmp.ne.s32.totalorder %s389, %s403
      %p405 = scmp.eq.s32.totalorder %s45, 0
      %p406 = por %p404, %p405
      %s407 = ssub.s32 %s46, %s58
      %s408 = ssub.s32 %s47, %s54
      %s409 = sor.u32 %s407, %s408
      %p410 = scmp.eq.s32.totalorder %s409, 0
      %s412 = sadd.s32 %s411, 1
      %s413 = scalar_select %p410, %s411, %s412
      %p416 = pneg %p410
      %p417 = scmp.eq.s32.totalorder %s39, 3
      %p418 = por %p416, %p417
      %p419 = scmp.ne.s32.totalorder %s411, %s414
      %p420 = scmp.eq.s32.totalorder %s39, 0
      %p421 = por %p419, %p420
      %p422 = scmp.ne.s32.totalorder %s411, %s414
      %p423 = scmp.eq.s32.totalorder %s44, 3
      %p424 = por %p422, %p423
      %p425 = scmp.ne.s32.totalorder %s414, %s415
      %p426 = scmp.eq.s32.totalorder %s44, 0
      %p427 = por %p425, %p426
      %p428 = scmp.ne.s32.totalorder %s414, %s415
      %p429 = scmp.eq.s32.totalorder %s45, 3
      %p430 = por %p428, %p429
      %p432 = scmp.ne.s32.totalorder %s415, %s431
      %p433 = scmp.eq.s32.totalorder %s45, 0
      %p434 = por %p432, %p433
      %s435 = ssub.s32 %s46, %s58
      %s436 = ssub.s32 %s47, %s54
      %s437 = sor.u32 %s435, %s436
      %p438 = scmp.eq.s32.totalorder %s437, 0
      %s440 = sadd.s32 %s439, 1
      %s441 = scalar_select %p438, %s439, %s440
      %p444 = pneg %p438
      %p445 = scmp.eq.s32.totalorder %s39, 3
      %p446 = por %p444, %p445
      %p447 = scmp.ne.s32.totalorder %s439, %s442
      %p448 = scmp.eq.s32.totalorder %s39, 0
      %p449 = por %p447, %p448
      %p450 = scmp.ne.s32.totalorder %s439, %s442
      %p451 = scmp.eq.s32.totalorder %s44, 3
      %p452 = por %p450, %p451
      %p453 = scmp.ne.s32.totalorder %s442, %s443
      %p454 = scmp.eq.s32.totalorder %s44, 0
      %p455 = por %p453, %p454
      %p456 = scmp.ne.s32.totalorder %s442, %s443
      %p457 = scmp.eq.s32.totalorder %s45, 3
      %p458 = por %p456, %p457
      %p460 = scmp.ne.s32.totalorder %s443, %s459
      %p461 = scmp.eq.s32.totalorder %s45, 0
      %p462 = por %p460, %p461
      %p463 = scmp.le.s32.totalorder 1, %s39
      %p464 = scmp.lt.s32.totalorder %s39, 5
      %p465 = pnand %p463, %p464
      %p466 = pneg %p465
      // Predicated region
      $region9: #{tpu_custom_call.1} parent=5 // pred_check
        _
      $region10: #{tpu_custom_call.1} parent=5 // pred_check_branch
        %468 = sbr.rel (%p465) target = $region12
      $region11: #{tpu_custom_call.1} parent=5 // pred_region
        %s469 = ssub.s32 %s39, 1
        // Predicated region
        $region13: #{tpu_custom_call.1} parent=11 // pred_check
          %p470 = pneg %p126
        $region14: #{tpu_custom_call.1} parent=11 // pred_check_branch
          %472 = sbr.rel (%p470) target = $region16
        $region15: #{tpu_custom_call.1} parent=11 // pred_region
          _
        $region16: #{tpu_custom_call.1} parent=11 // pred_fallthru
          _
        // Predicated region
        $region17: #{tpu_custom_call.1} parent=11 // pred_check
          %p473 = pneg %p147
        $region18: #{tpu_custom_call.1} parent=11 // pred_check_branch
          %475 = sbr.rel (%p473) target = $region20
        $region19: #{tpu_custom_call.1} parent=11 // pred_region
          %477 = vsyncadd [#allocation10], 0
          %s479 = sshll.u32 %s3, 4
          %s480 = int_to_ptr.hbm [resolvable:$true] %s479
          %s481 = sshll.u32 [#allocation11], 4
          %s482 = int_to_ptr.vmem [resolvable:$true] %s481
          %484 = dma.hbm_to_vmem [thread:$0]  %s480, 16, %s482, [#allocation10]
        $region20: #{tpu_custom_call.1} parent=11 // pred_fallthru
          _
        // Predicated region
        $region21: #{tpu_custom_call.1} parent=11 // pred_check
          %p485 = pneg %p168
        $region22: #{tpu_custom_call.1} parent=11 // pred_check_branch
          %487 = sbr.rel (%p485) target = $region24
        $region23: #{tpu_custom_call.1} parent=11 // pred_region
          %489 = vsyncadd [#allocation13], 0
          %s490 = sshll.u32 %s4, 4
          %s491 = int_to_ptr.hbm [resolvable:$true] %s490
          %s492 = sshll.u32 [#allocation12], 4
          %s493 = int_to_ptr.vmem [resolvable:$true] %s492
          %498 = dma.hbm_to_vmem [thread:$0]  %s491, 1024, %s493, [#allocation13], 64, 64, 4
        $region24: #{tpu_custom_call.1} parent=11 // pred_fallthru
          _
        // Predicated region
        $region25: #{tpu_custom_call.1} parent=11 // pred_check
          %p499 = pneg %p189
        $region26: #{tpu_custom_call.1} parent=11 // pred_check_branch
          %501 = sbr.rel (%p499) target = $region28
        $region27: #{tpu_custom_call.1} parent=11 // pred_region
          %503 = vsyncadd [#allocation13], 0
          %s505 = sshll.u32 %s5, 4
          %s506 = int_to_ptr.hbm [resolvable:$true] %s505
          %s507 = sshll.u32 [#allocation14], 4
          %s508 = int_to_ptr.vmem [resolvable:$true] %s507
          %510 = dma.hbm_to_vmem [thread:$0]  %s506, 16, %s508, [#allocation13]
        $region28: #{tpu_custom_call.1} parent=11 // pred_fallthru
          _
        // Predicated region
        $region29: #{tpu_custom_call.1} parent=11 // pred_check
          %p511 = pneg %p210
        $region30: #{tpu_custom_call.1} parent=11 // pred_check_branch
          %513 = sbr.rel (%p511) target = $region32
        $region31: #{tpu_custom_call.1} parent=11 // pred_region
          %515 = vsyncadd [#allocation16], 0
          %s516 = sshll.u32 %s6, 4
          %s517 = int_to_ptr.hbm [resolvable:$true] %s516
          %s518 = sshll.u32 [#allocation15], 4
          %s519 = int_to_ptr.vmem [resolvable:$true] %s518
          %524 = dma.hbm_to_vmem [thread:$0]  %s517, 2048, %s519, [#allocation16], 128, 128, 8
        $region32: #{tpu_custom_call.1} parent=11 // pred_fallthru
          _
        // Predicated region
        $region33: #{tpu_custom_call.1} parent=11 // pred_check
          %p525 = pneg %p231
        $region34: #{tpu_custom_call.1} parent=11 // pred_check_branch
          %527 = sbr.rel (%p525) target = $region36
        $region35: #{tpu_custom_call.1} parent=11 // pred_region
          _
        $region36: #{tpu_custom_call.1} parent=11 // pred_fallthru
          _
        // Predicated region
        $region37: #{tpu_custom_call.1} parent=11 // pred_check
          %p528 = pneg %p252
        $region38: #{tpu_custom_call.1} parent=11 // pred_check_branch
          %530 = sbr.rel (%p528) target = $region40
        $region39: #{tpu_custom_call.1} parent=11 // pred_region
          %532 = vsyncadd [#allocation16], 0
          %s533 = sshll.u32 %s8, 4
          %s534 = int_to_ptr.hbm [resolvable:$true] %s533
          %s535 = sshll.u32 [#allocation17], 4
          %s536 = int_to_ptr.vmem [resolvable:$true] %s535
          %541 = dma.hbm_to_vmem [thread:$0]  %s534, 1024, %s536, [#allocation16], 64, 64, 4
        $region40: #{tpu_custom_call.1} parent=11 // pred_fallthru
          _
        // Predicated region
        $region41: #{tpu_custom_call.1} parent=11 // pred_check
          %p542 = pneg %p273
        $region42: #{tpu_custom_call.1} parent=11 // pred_check_branch
          %544 = sbr.rel (%p542) target = $region44
        $region43: #{tpu_custom_call.1} parent=11 // pred_region
          _
        $region44: #{tpu_custom_call.1} parent=11 // pred_fallthru
          _
        // Predicated region
        $region45: #{tpu_custom_call.1} parent=11 // pred_check
          %p545 = pneg %p294
        $region46: #{tpu_custom_call.1} parent=11 // pred_check_branch
          %547 = sbr.rel (%p545) target = $region48
        $region47: #{tpu_custom_call.1} parent=11 // pred_region
          _
        $region48: #{tpu_custom_call.1} parent=11 // pred_fallthru
          _
        // Predicated region
        $region49: #{tpu_custom_call.1} parent=11 // pred_check
          %p548 = pneg %p315
        $region50: #{tpu_custom_call.1} parent=11 // pred_check_branch
          %550 = sbr.rel (%p548) target = $region52
        $region51: #{tpu_custom_call.1} parent=11 // pred_region
          _
        $region52: #{tpu_custom_call.1} parent=11 // pred_fallthru
          _
        // Predicated region
        $region53: #{tpu_custom_call.1} parent=11 // pred_check
          %p551 = pneg %p336
        $region54: #{tpu_custom_call.1} parent=11 // pred_check_branch
          %553 = sbr.rel (%p551) target = $region56
        $region55: #{tpu_custom_call.1} parent=11 // pred_region
          %555 = vsyncadd [#allocation19], 0
          %s556 = sshll.u32 %s12, 4
          %s557 = int_to_ptr.hbm [resolvable:$true] %s556
          %s558 = sshll.u32 [#allocation18], 4
          %s559 = int_to_ptr.vmem [resolvable:$true] %s558
          %564 = dma.hbm_to_vmem [thread:$0]  %s557, 4096, %s559, [#allocation19], 256, 256, 16
        $region56: #{tpu_custom_call.1} parent=11 // pred_fallthru
          _
        // Predicated region
        $region57: #{tpu_custom_call.1} parent=11 // pred_check
          %p565 = pneg %p357
        $region58: #{tpu_custom_call.1} parent=11 // pred_check_branch
          %567 = sbr.rel (%p565) target = $region60
        $region59: #{tpu_custom_call.1} parent=11 // pred_region
          _
        $region60: #{tpu_custom_call.1} parent=11 // pred_fallthru
          _
        // Predicated region
        $region61: #{tpu_custom_call.1} parent=11 // pred_check
          %p568 = pneg %p378
        $region62: #{tpu_custom_call.1} parent=11 // pred_check_branch
          %570 = sbr.rel (%p568) target = $region64
        $region63: #{tpu_custom_call.1} parent=11 // pred_region
          %572 = vsyncadd [#allocation19], 0
          %s573 = sshll.u32 %s14, 4
          %s574 = int_to_ptr.hbm [resolvable:$true] %s573
          %s575 = sshll.u32 [#allocation20], 4
          %s576 = int_to_ptr.vmem [resolvable:$true] %s575
          %581 = dma.hbm_to_vmem [thread:$0]  %s574, 4096, %s576, [#allocation19], 64, 64, 4
        $region64: #{tpu_custom_call.1} parent=11 // pred_fallthru
          _
        // Predicated region
        $region65: #{tpu_custom_call.1} parent=11 // pred_check
          %p582 = pneg %p399
        $region66: #{tpu_custom_call.1} parent=11 // pred_check_branch
          %584 = sbr.rel (%p582) target = $region68
        $region67: #{tpu_custom_call.1} parent=11 // pred_region
          _
        $region68: #{tpu_custom_call.1} parent=11 // pred_fallthru
          _
      $region12: #{tpu_custom_call.1} parent=5 // pred_fallthru
        _
      %p585 = scmp.lt.s32.totalorder %s39, 4
      // Predicated region
      $region69: #{tpu_custom_call.1} parent=5 // pred_check
        %p586 = pneg %p585
      $region70: #{tpu_custom_call.1} parent=5 // pred_check_branch
        %588 = sbr.rel (%p586) target = $region72
      $region71: #{tpu_custom_call.1} parent=5 // pred_region
        // Predicated region
        $region73: #{tpu_custom_call.1} parent=71 // pred_check
          %p589 = pneg %p73
        $region74: #{tpu_custom_call.1} parent=71 // pred_check_branch
          %591 = sbr.rel (%p589) target = $region76
        $region75: #{tpu_custom_call.1} parent=71 // pred_region
          %s592 = sand.u32 %s63, 1
          %s593 = scalar_lea.sflag [#allocation7], %s592
          %s594 = sand.u32 %s63, 1
          %s595 = smul.addr %s594, 8
          %s596 = scalar_lea.vmem [#allocation6], %s595
          %598 = vsyncadd %s593, 0
          %s599 = smul.addr %s46, 2
          %s600 = sadd.s32 %s47, %s599
          %s601 = smul.addr %s600, 8
          %s602 = scalar_lea.hbm %s0, %s601
          %s604 = sshll.u32 %s602, 4
          %s605 = int_to_ptr.hbm [resolvable:$true] %s604
          %s606 = sshll.u32 %s596, 4
          %s607 = int_to_ptr.vmem [resolvable:$true] %s606
          %609 = dma.hbm_to_vmem [thread:$0]  %s605, 128, %s607, %s593
        $region76: #{tpu_custom_call.1} parent=71 // pred_fallthru
          _
        // Predicated region
        $region77: #{tpu_custom_call.1} parent=71 // pred_check
          %p610 = pneg %p99
        $region78: #{tpu_custom_call.1} parent=71 // pred_check_branch
          %612 = sbr.rel (%p610) target = $region80
        $region79: #{tpu_custom_call.1} parent=71 // pred_region
          %s613 = sand.u32 %s39, 1
          %s614 = scalar_lea.sflag [#allocation10], %s613
          %s615 = sand.u32 %s89, 1
          %s616 = smul.addr %s615, 16
          %s617 = scalar_lea.vmem [#allocation9], %s616
          %619 = vsyncadd %s614, 0
          %s620 = smul.addr %s46, 2
          %s621 = smul.addr %s620, 8
          %s622 = scalar_lea.hbm %s1, %s621
          %s623 = sshll.u32 %s622, 4
          %s624 = int_to_ptr.hbm [resolvable:$true] %s623
          %s625 = sshll.u32 %s617, 4
          %s626 = int_to_ptr.vmem [resolvable:$true] %s625
          %631 = dma.hbm_to_vmem [thread:$0]  %s624, 256, %s626, %s614, 128, 128, 8
        $region80: #{tpu_custom_call.1} parent=71 // pred_fallthru
          _
      $region72: #{tpu_custom_call.1} parent=5 // pred_fallthru
        _
      %p632 = scmp.le.s32.totalorder 1, %s39
      %p633 = scmp.lt.s32.totalorder %s39, 5
      %p634 = pnand %p632, %p633
      %p635 = pneg %p634
      // Predicated region
      $region81: #{tpu_custom_call.1} parent=5 // pred_check
        _
      $region82: #{tpu_custom_call.1} parent=5 // pred_check_branch
        %637 = sbr.rel (%p634) target = $region84
      $region83: #{tpu_custom_call.1} parent=5 // pred_region
        %s638 = ssub.s32 %s39, 1
        %s639 = sand.u32 %s66, 1
        %s640 = scalar_lea.sflag [#allocation7], %s639
        %s641 = sand.u32 %s66, 1
        %s642 = smul.addr %s641, 8
        %s643 = scalar_lea.vmem [#allocation6], %s642
        // Predicated region
        $region85: #{tpu_custom_call.1} parent=83 // pred_check
          %p644 = pneg %p79
        $region86: #{tpu_custom_call.1} parent=83 // pred_check_branch
          %646 = sbr.rel (%p644) target = $region88
        $region87: #{tpu_custom_call.1} parent=83 // pred_region
          %648 = dma.done %s640, 128
        $region88: #{tpu_custom_call.1} parent=83 // pred_fallthru
          _
        %s649 = sand.u32 %s44, 1
        %s650 = scalar_lea.sflag [#allocation10], %s649
        %s651 = sand.u32 %s92, 1
        %s652 = smul.addr %s651, 16
        %s653 = scalar_lea.vmem [#allocation9], %s652
        // Predicated region
        $region89: #{tpu_custom_call.1} parent=83 // pred_check
          %p654 = pneg %p105
        $region90: #{tpu_custom_call.1} parent=83 // pred_check_branch
          %656 = sbr.rel (%p654) target = $region92
        $region91: #{tpu_custom_call.1} parent=83 // pred_region
          %658 = dma.done %s650, 256
        $region92: #{tpu_custom_call.1} parent=83 // pred_fallthru
          _
        // Predicated region
        $region93: #{tpu_custom_call.1} parent=83 // pred_check
          %p659 = pneg %p147
        $region94: #{tpu_custom_call.1} parent=83 // pred_check_branch
          %661 = sbr.rel (%p659) target = $region96
        $region95: #{tpu_custom_call.1} parent=83 // pred_region
          %663 = dma.done [#allocation10], 16
        $region96: #{tpu_custom_call.1} parent=83 // pred_fallthru
          _
        // Predicated region
        $region97: #{tpu_custom_call.1} parent=83 // pred_check
          %p664 = pneg %p168
        $region98: #{tpu_custom_call.1} parent=83 // pred_check_branch
          %666 = sbr.rel (%p664) target = $region100
        $region99: #{tpu_custom_call.1} parent=83 // pred_region
          %668 = dma.done [#allocation13], 1024
        $region100: #{tpu_custom_call.1} parent=83 // pred_fallthru
          _
        // Predicated region
        $region101: #{tpu_custom_call.1} parent=83 // pred_check
          %p669 = pneg %p189
        $region102: #{tpu_custom_call.1} parent=83 // pred_check_branch
          %671 = sbr.rel (%p669) target = $region104
        $region103: #{tpu_custom_call.1} parent=83 // pred_region
          %673 = dma.done [#allocation13], 16
        $region104: #{tpu_custom_call.1} parent=83 // pred_fallthru
          _
        // Predicated region
        $region105: #{tpu_custom_call.1} parent=83 // pred_check
          %p674 = pneg %p210
        $region106: #{tpu_custom_call.1} parent=83 // pred_check_branch
          %676 = sbr.rel (%p674) target = $region108
        $region107: #{tpu_custom_call.1} parent=83 // pred_region
          %678 = dma.done [#allocation16], 2048
        $region108: #{tpu_custom_call.1} parent=83 // pred_fallthru
          _
        // Predicated region
        $region109: #{tpu_custom_call.1} parent=83 // pred_check
          %p679 = pneg %p252
        $region110: #{tpu_custom_call.1} parent=83 // pred_check_branch
          %681 = sbr.rel (%p679) target = $region112
        $region111: #{tpu_custom_call.1} parent=83 // pred_region
          %683 = dma.done [#allocation16], 1024
        $region112: #{tpu_custom_call.1} parent=83 // pred_fallthru
          _
        // Predicated region
        $region113: #{tpu_custom_call.1} parent=83 // pred_check
          %p684 = pneg %p336
        $region114: #{tpu_custom_call.1} parent=83 // pred_check_branch
          %686 = sbr.rel (%p684) target = $region116
        $region115: #{tpu_custom_call.1} parent=83 // pred_region
          %688 = dma.done [#allocation19], 4096
        $region116: #{tpu_custom_call.1} parent=83 // pred_fallthru
          _
        // Predicated region
        $region117: #{tpu_custom_call.1} parent=83 // pred_check
          %p689 = pneg %p378
        $region118: #{tpu_custom_call.1} parent=83 // pred_check_branch
          %691 = sbr.rel (%p689) target = $region120
        $region119: #{tpu_custom_call.1} parent=83 // pred_region
          %693 = dma.done [#allocation19], 4096
        $region120: #{tpu_custom_call.1} parent=83 // pred_fallthru
          _
        %s694 = sand.u32 %s66, 1
        %s695 = scalar_lea.sflag [#allocation7], %s694
        %s696 = sand.u32 %s66, 1
        %s697 = smul.addr %s696, 8
        %s698 = scalar_lea.vmem [#allocation6], %s697
        %p699 = pneg %p79
        %p700 = pneg %p76
        %s701 = sand.u32 %s44, 1
        %s702 = scalar_lea.sflag [#allocation10], %s701
        %s703 = sand.u32 %s92, 1
        %s704 = smul.addr %s703, 16
        %s705 = scalar_lea.vmem [#allocation9], %s704
        %p706 = pneg %p105
        %p707 = pneg %p102
        %p708 = pneg %p126
        %p709 = pneg %p123
        %p710 = pneg %p147
        %p711 = pneg %p144
        %p712 = pneg %p168
        %p713 = pneg %p165
        %p714 = pneg %p189
        %p715 = pneg %p186
        %p716 = pneg %p210
        %p717 = pneg %p207
        %p718 = pneg %p231
        %p719 = pneg %p228
        %p720 = pneg %p252
        %p721 = pneg %p249
        %p722 = pneg %p273
        %p723 = pneg %p270
        %p724 = pneg %p294
        %p725 = pneg %p291
        %p726 = pneg %p315
        %p727 = pneg %p312
        %p728 = pneg %p336
        %p729 = pneg %p333
        %p730 = pneg %p357
        %p731 = pneg %p354
        %p732 = pneg %p378
        %p733 = pneg %p375
        %p734 = pneg %p399
        %p735 = pneg %p396
        %p736 = pneg %p427
        %p737 = pneg %p424
        %s738 = sand.u32 %s414, 1
        %s739 = scalar_lea.sflag [#allocation8], %s738
        %s740 = sand.u32 %s414, 1
        %s741 = smul.addr %s740, 8
        %s742 = scalar_lea.vmem [#allocation21], %s741
        %p743 = pneg %p455
        %p744 = pneg %p452
        %s745 = sand.u32 %s442, 1
        %s746 = scalar_lea.sflag [#allocation23], %s745
        %s747 = sand.u32 %s442, 1
        %s748 = smul.addr %s747, 32
        %s749 = scalar_lea.vmem [#allocation22], %s748
        %v751 = vld [vmem:[%s643] sm:$0xff]
        %v752 = vld [vmem:[%s653] sm:$0xff]
        %v753 = vld [vmem:[%s653 + $0x8] sm:$0xff]
        %754 = vadd.xlane.f32.xlu0 %v751
        %v755 = vpop.xlane.xlu0 %754
        %v756 = vrcp.pop 128.0
        %v757 = vmul.f32 128.0, %v756
        %v758 = vsub.f32 1.0, %v757
        %v759 = vmul.f32 %v756, %v758
        %v760 = vadd.f32 %v756, %v759
        %vm761 = vweird.f32 %v756
        %v762 = vsel %vm761, %v756, %v760
        %v763 = vmul.f32 %v755, %v762
        %v764 = vsub.f32 %v751, %v763
        %v765 = vmul.f32 %v764, %v764
        %766 = vadd.xlane.f32.xlu0 %v765
        %v767 = vpop.xlane.xlu0 %766
        %v768 = vmul.f32 %v767, %v762
        %v769 = vadd.f32 %v768, 1e-05
        %v770 = vrsqrt.pop %v769
        %v771 = vmul.f32 %v770, %v769
        %v772 = vmul.f32 %v771, %v770
        %v773 = vmul.f32 0.5, %v772
        %v774 = vsub.f32 1.5, %v773
        %v775 = vmul.f32 %v770, %v774
        %vm776 = vweird.f32 %v769
        %vm777 = vweird.f32 %v770
        %vm778 = vmor %vm776, %vm777
        %v779 = vsel %vm778, %v770, %v775
        %v780 = vmul.f32 %v764, %v779
        %v781 = vld [vmem:[%s2] sm:$0x1]
        %v783 = vperm.slane %v781, 0
        %v785 = vmul.f32 %v780, %v783
        %v786 = vld [vmem:[#allocation11] sm:$0x1]
        %v788 = vperm.slane %v786, 0
        %v790 = vadd.f32 %v785, %v788
        %791 = vadd.xlane.f32.xlu0 %v752
        %v792 = vpop.xlane.xlu0 %791
        %793 = vadd.xlane.f32.xlu0 %v753
        %v794 = vpop.xlane.xlu0 %793
        %v795 = vmul.f32 %v792, %v762
        %v796 = vmul.f32 %v794, %v762
        %v797 = vsub.f32 %v752, %v795
        %v798 = vsub.f32 %v753, %v796
        %v799 = vmul.f32 %v797, %v797
        %v800 = vmul.f32 %v798, %v798
        %801 = vadd.xlane.f32.xlu0 %v799
        %v802 = vpop.xlane.xlu0 %801
        %803 = vadd.xlane.f32.xlu0 %v800
        %v804 = vpop.xlane.xlu0 %803
        %v805 = vmul.f32 %v802, %v762
        %v806 = vmul.f32 %v804, %v762
        %v807 = vadd.f32 %v805, 1e-05
        %v808 = vadd.f32 %v806, 1e-05
        %v809 = vrsqrt.pop %v807
        %v810 = vmul.f32 %v809, %v807
        %v811 = vmul.f32 %v810, %v809
        %v812 = vmul.f32 0.5, %v811
        %v813 = vsub.f32 1.5, %v812
        %v814 = vmul.f32 %v809, %v813
        %vm815 = vweird.f32 %v807
        %vm816 = vweird.f32 %v809
        %vm817 = vmor %vm815, %vm816
        %v818 = vsel %vm817, %v809, %v814
        %v819 = vrsqrt.pop %v808
        %v820 = vmul.f32 %v819, %v808
        %v821 = vmul.f32 %v820, %v819
        %v822 = vmul.f32 0.5, %v821
        %v823 = vsub.f32 1.5, %v822
        %v824 = vmul.f32 %v819, %v823
        %vm825 = vweird.f32 %v808
        %vm826 = vweird.f32 %v819
        %vm827 = vmor %vm825, %vm826
        %v828 = vsel %vm827, %v819, %v824
        %v829 = vmul.f32 %v797, %v818
        %v830 = vmul.f32 %v798, %v828
        %v831 = vmul.f32 %v829, %v783
        %v832 = vmul.f32 %v830, %v783
        %v833 = vadd.f32 %v831, %v788
        %v834 = vadd.f32 %v832, %v788
        %v835 = vpack.c.bf16 %v790, %v790
        %v836 = vld [vmem:[#allocation12] sm:$0xf]
        %v837 = vld [vmem:[#allocation12 + $0x4] sm:$0xf]
        %v838 = vld [vmem:[#allocation12 + $0x8] sm:$0xf]
        %v839 = vld [vmem:[#allocation12 + $0xc] sm:$0xf]
        %v840 = vld [vmem:[#allocation12 + $0x10] sm:$0xf]
        %v841 = vld [vmem:[#allocation12 + $0x14] sm:$0xf]
        %v842 = vld [vmem:[#allocation12 + $0x18] sm:$0xf]
        %v843 = vld [vmem:[#allocation12 + $0x1c] sm:$0xf]
        %v844 = vld [vmem:[#allocation12 + $0x20] sm:$0xf]
        %v845 = vld [vmem:[#allocation12 + $0x24] sm:$0xf]
        %v846 = vld [vmem:[#allocation12 + $0x28] sm:$0xf]
        %v847 = vld [vmem:[#allocation12 + $0x2c] sm:$0xf]
        %v848 = vld [vmem:[#allocation12 + $0x30] sm:$0xf]
        %v849 = vld [vmem:[#allocation12 + $0x34] sm:$0xf]
        %v850 = vld [vmem:[#allocation12 + $0x38] sm:$0xf]
        %v851 = vld [vmem:[#allocation12 + $0x3c] sm:$0xf]
        %v852 = vld [vmem:[#allocation14] sm:$0x1]
        %v854 = vperm.slane %v852, 0
        %v872 = vunpack.c.l.b16 %v836
        %v873 = vunpack.c.l.b16 %v837
        %v874 = vunpack.c.l.b16 %v838
        %v875 = vunpack.c.l.b16 %v839
        %v876 = vunpack.c.l.b16 %v840
        %v877 = vunpack.c.l.b16 %v841
        %v878 = vunpack.c.l.b16 %v842
        %v879 = vunpack.c.l.b16 %v843
        %v880 = vunpack.c.l.b16 %v844
        %v881 = vunpack.c.l.b16 %v845
        %v882 = vunpack.c.l.b16 %v846
        %v883 = vunpack.c.l.b16 %v847
        %v884 = vunpack.c.l.b16 %v848
        %v885 = vunpack.c.l.b16 %v849
        %v886 = vunpack.c.l.b16 %v850
        %v887 = vunpack.c.l.b16 %v851
        %v888 = vpack.c.b16 %v873, %v872
        %v889 = vpack.c.b16 %v875, %v874
        %v890 = vpack.c.b16 %v877, %v876
        %v891 = vpack.c.b16 %v879, %v878
        %v892 = vpack.c.b16 %v881, %v880
        %v893 = vpack.c.b16 %v883, %v882
        %v894 = vpack.c.b16 %v885, %v884
        %v895 = vpack.c.b16 %v887, %v886
        %904 = vmatpush.bf16.msra.mxu0 %v895
        %905 = vmatpush.bf16.msra.mxu0 %v894
        %906 = vmatpush.bf16.msra.mxu0 %v893
        %907 = vmatpush.bf16.msra.mxu0 %v892
        %908 = vmatpush.bf16.msra.mxu0 %v891
        %909 = vmatpush.bf16.msra.mxu0 %v890
        %910 = vmatpush.bf16.msra.mxu0 %v889
        %911 = vmatpush.bf16.msra.mxu0 %v888
        %912 = vmatmul.bf16.gmra.mxu0 %v835
        %v913 = vpop.f32.mrf.mxu0
        %v914 = vadd.f32 %v854, %v913
        %v915 = vpop.f32.mrf.mxu0
        %916 = vdwg.mxu0
        %v917 = vpack.c.bf16 %v834, %v833
        %v918 = vld [vmem:[#allocation15] sm:$0xff]
        %v919 = vld [vmem:[#allocation15 + $0x8] sm:$0xff]
        %v920 = vld [vmem:[#allocation15 + $0x10] sm:$0xff]
        %v921 = vld [vmem:[#allocation15 + $0x18] sm:$0xff]
        %v922 = vld [vmem:[#allocation15 + $0x20] sm:$0xff]
        %v923 = vld [vmem:[#allocation15 + $0x28] sm:$0xff]
        %v924 = vld [vmem:[#allocation15 + $0x30] sm:$0xff]
        %v925 = vld [vmem:[#allocation15 + $0x38] sm:$0xff]
        %v926 = vld [vmem:[#allocation15 + $0x40] sm:$0xff]
        %v927 = vld [vmem:[#allocation15 + $0x48] sm:$0xff]
        %v928 = vld [vmem:[#allocation15 + $0x50] sm:$0xff]
        %v929 = vld [vmem:[#allocation15 + $0x58] sm:$0xff]
        %v930 = vld [vmem:[#allocation15 + $0x60] sm:$0xff]
        %v931 = vld [vmem:[#allocation15 + $0x68] sm:$0xff]
        %v932 = vld [vmem:[#allocation15 + $0x70] sm:$0xff]
        %v933 = vld [vmem:[#allocation15 + $0x78] sm:$0xff]
        %v934 = vld [vmem:[%s7] sm:$0x3]
        %v936 = vperm.slane %v934, 0
        %v937 = vperm.slane %v934, 1
        %v956 = vunpack.c.l.b16 %v918
        %v957 = vunpack.c.h.b16 %v918
        %v958 = vunpack.c.l.b16 %v919
        %v959 = vunpack.c.h.b16 %v919
        %v960 = vunpack.c.l.b16 %v920
        %v961 = vunpack.c.h.b16 %v920
        %v962 = vunpack.c.l.b16 %v921
        %v963 = vunpack.c.h.b16 %v921
        %v964 = vunpack.c.l.b16 %v922
        %v965 = vunpack.c.h.b16 %v922
        %v966 = vunpack.c.l.b16 %v923
        %v967 = vunpack.c.h.b16 %v923
        %v968 = vunpack.c.l.b16 %v924
        %v969 = vunpack.c.h.b16 %v924
        %v970 = vunpack.c.l.b16 %v925
        %v971 = vunpack.c.h.b16 %v925
        %v972 = vunpack.c.l.b16 %v926
        %v973 = vunpack.c.h.b16 %v926
        %v974 = vunpack.c.l.b16 %v927
        %v975 = vunpack.c.h.b16 %v927
        %v976 = vunpack.c.l.b16 %v928
        %v977 = vunpack.c.h.b16 %v928
        %v978 = vunpack.c.l.b16 %v929
        %v979 = vunpack.c.h.b16 %v929
        %v980 = vunpack.c.l.b16 %v930
        %v981 = vunpack.c.h.b16 %v930
        %v982 = vunpack.c.l.b16 %v931
        %v983 = vunpack.c.h.b16 %v931
        %v984 = vunpack.c.l.b16 %v932
        %v985 = vunpack.c.h.b16 %v932
        %v986 = vunpack.c.l.b16 %v933
        %v987 = vunpack.c.h.b16 %v933
        %v988 = vpack.c.b16 %v958, %v956
        %v989 = vpack.c.b16 %v959, %v957
        %v990 = vpack.c.b16 %v962, %v960
        %v991 = vpack.c.b16 %v963, %v961
        %v992 = vpack.c.b16 %v966, %v964
        %v993 = vpack.c.b16 %v967, %v965
        %v994 = vpack.c.b16 %v970, %v968
        %v995 = vpack.c.b16 %v971, %v969
        %v996 = vpack.c.b16 %v974, %v972
        %v997 = vpack.c.b16 %v975, %v973
        %v998 = vpack.c.b16 %v978, %v976
        %v999 = vpack.c.b16 %v979, %v977
        %v1000 = vpack.c.b16 %v982, %v980
        %v1001 = vpack.c.b16 %v983, %v981
        %v1002 = vpack.c.b16 %v986, %v984
        %v1003 = vpack.c.b16 %v987, %v985
        %1020 = vmatpush.bf16.msra.mxu0 %v1002
        %1021 = vmatpush.bf16.msra.mxu0 %v1000
        %1022 = vmatpush.bf16.msra.mxu0 %v998
        %1023 = vmatpush.bf16.msra.mxu0 %v996
        %1024 = vmatpush.bf16.msra.mxu0 %v994
        %1025 = vmatpush.bf16.msra.mxu0 %v992
        %1026 = vmatpush.bf16.msra.mxu0 %v990
        %1027 = vmatpush.bf16.msra.mxu0 %v988
        %1028 = vmatmul.bf16.gmra.mxu0 %v917
        %v1029 = vpop.f32.mrf.mxu0
        %v1030 = vadd.f32 %v936, %v1029
        %v1031 = vpop.f32.mrf.mxu0
        %v1032 = vadd.f32 %v936, %v1031
        %1033 = vdwg.mxu0
        %1034 = vmatpush.bf16.msra.mxu0 %v1003
        %1035 = vmatpush.bf16.msra.mxu0 %v1001
        %1036 = vmatpush.bf16.msra.mxu0 %v999
        %1037 = vmatpush.bf16.msra.mxu0 %v997
        %1038 = vmatpush.bf16.msra.mxu0 %v995
        %1039 = vmatpush.bf16.msra.mxu0 %v993
        %1040 = vmatpush.bf16.msra.mxu0 %v991
        %1041 = vmatpush.bf16.msra.mxu0 %v989
        %1042 = vmatmul.bf16.gmra.mxu0 %v917
        %v1043 = vpop.f32.mrf.mxu0
        %v1044 = vadd.f32 %v937, %v1043
        %v1045 = vpop.f32.mrf.mxu0
        %v1046 = vadd.f32 %v937, %v1045
        %1047 = vdwg.mxu0
        %vm1048 = vcmask 261120
        %1049 = vst.msk [vmem:[#allocation2] sm:$0xff] %vm1048, %v914
        %1050 = vst.msk [vmem:[#allocation3] sm:$0xff] %vm1048, %v1030
        %1051 = vst.msk [vmem:[#allocation3 + $0x8] sm:$0xff] %vm1048, %v1032
        %1052 = vst.msk [vmem:[#allocation4] sm:$0xff] %vm1048, %v1044
        %1053 = vst.msk [vmem:[#allocation4 + $0x8] sm:$0xff] %vm1048, %v1046
        %1055 = vrot.lane.b32.xlu0 %v914, 96
        %v1056 = vpop.permute.xlu0 %1055
        %s1058 = scalar_lea.vmem [#allocation2], 8
        %1059 = vst.msk [vmem:[%s1058] sm:$0xff] %vm1048, %v1056
        %1062 = vrot.lane.b32.xlu0 %v1030, 96
        %v1063 = vpop.permute.xlu0 %1062
        %1064 = vrot.lane.b32.xlu0 %v1032, 96
        %v1065 = vpop.permute.xlu0 %1064
        %s1068 = scalar_lea.vmem [#allocation3], 16
        %1069 = vst.msk [vmem:[%s1068] sm:$0xff] %vm1048, %v1063
        %1070 = vst.msk [vmem:[%s1068 + $0x8] sm:$0xff] %vm1048, %v1065
        %1073 = vrot.lane.b32.xlu0 %v1044, 96
        %v1074 = vpop.permute.xlu0 %1073
        %1075 = vrot.lane.b32.xlu0 %v1046, 96
        %v1076 = vpop.permute.xlu0 %1075
        %s1079 = scalar_lea.vmem [#allocation4], 16
        %1080 = vst.msk [vmem:[%s1079] sm:$0xff] %vm1048, %v1074
        %1081 = vst.msk [vmem:[%s1079 + $0x8] sm:$0xff] %vm1048, %v1076
        %1082 = vrot.lane.b32.xlu0 %v914, 64
        %v1083 = vpop.permute.xlu0 %1082
        %s1085 = scalar_lea.vmem [#allocation2], 16
        %1086 = vst.msk [vmem:[%s1085] sm:$0xff] %vm1048, %v1083
        %1087 = vrot.lane.b32.xlu0 %v1030, 64
        %v1088 = vpop.permute.xlu0 %1087
        %1089 = vrot.lane.b32.xlu0 %v1032, 64
        %v1090 = vpop.permute.xlu0 %1089
        %s1093 = scalar_lea.vmem [#allocation3], 32
        %1094 = vst.msk [vmem:[%s1093] sm:$0xff] %vm1048, %v1088
        %1095 = vst.msk [vmem:[%s1093 + $0x8] sm:$0xff] %vm1048, %v1090
        %1096 = vrot.lane.b32.xlu0 %v1044, 64
        %v1097 = vpop.permute.xlu0 %1096
        %1098 = vrot.lane.b32.xlu0 %v1046, 64
        %v1099 = vpop.permute.xlu0 %1098
        %s1102 = scalar_lea.vmem [#allocation4], 32
        %1103 = vst.msk [vmem:[%s1102] sm:$0xff] %vm1048, %v1097
        %1104 = vst.msk [vmem:[%s1102 + $0x8] sm:$0xff] %vm1048, %v1099
        %1105 = vrot.lane.b32.xlu0 %v914, 32
        %v1106 = vpop.permute.xlu0 %1105
        %s1108 = scalar_lea.vmem [#allocation2], 24
        %1109 = vst.msk [vmem:[%s1108] sm:$0xff] %vm1048, %v1106
        %1110 = vrot.lane.b32.xlu0 %v1030, 32
        %v1111 = vpop.permute.xlu0 %1110
        %1112 = vrot.lane.b32.xlu0 %v1032, 32
        %v1113 = vpop.permute.xlu0 %1112
        %s1116 = scalar_lea.vmem [#allocation3], 48
        %1117 = vst.msk [vmem:[%s1116] sm:$0xff] %vm1048, %v1111
        %1118 = vst.msk [vmem:[%s1116 + $0x8] sm:$0xff] %vm1048, %v1113
        %1119 = vrot.lane.b32.xlu0 %v1044, 32
        %v1120 = vpop.permute.xlu0 %1119
        %1121 = vrot.lane.b32.xlu0 %v1046, 32
        %v1122 = vpop.permute.xlu0 %1121
        %s1125 = scalar_lea.vmem [#allocation4], 48
        %1126 = vst.msk [vmem:[%s1125] sm:$0xff] %vm1048, %v1120
        %1127 = vst.msk [vmem:[%s1125 + $0x8] sm:$0xff] %vm1048, %v1122
        %v1128 = vld [vmem:[#allocation2] sm:$0xff]
        %v1129 = vld [vmem:[#allocation2 + $0x8] sm:$0xff]
        %v1130 = vld [vmem:[#allocation2 + $0x10] sm:$0xff]
        %v1131 = vld [vmem:[#allocation2 + $0x18] sm:$0xff]
        %v1132 = vpack.c.bf16 %v1128, %v1128
        %v1133 = vpack.c.bf16 %v1129, %v1129
        %v1134 = vpack.c.bf16 %v1130, %v1130
        %v1135 = vpack.c.bf16 %v1131, %v1131
        %v1136 = vld [vmem:[#allocation3] sm:$0xff]
        %v1137 = vld [vmem:[#allocation3 + $0x8] sm:$0xff]
        %v1138 = vld [vmem:[#allocation3 + $0x10] sm:$0xff]
        %v1139 = vld [vmem:[#allocation3 + $0x18] sm:$0xff]
        %v1140 = vld [vmem:[#allocation3 + $0x20] sm:$0xff]
        %v1141 = vld [vmem:[#allocation3 + $0x28] sm:$0xff]
        %v1142 = vld [vmem:[#allocation3 + $0x30] sm:$0xff]
        %v1143 = vld [vmem:[#allocation3 + $0x38] sm:$0xff]
        %v1144 = vpack.c.bf16 %v1136, %v1136
        %v1145 = vpack.c.bf16 %v1137, %v1137
        %v1146 = vpack.c.bf16 %v1138, %v1138
        %v1147 = vpack.c.bf16 %v1139, %v1139
        %v1148 = vpack.c.bf16 %v1140, %v1140
        %v1149 = vpack.c.bf16 %v1141, %v1141
        %v1150 = vpack.c.bf16 %v1142, %v1142
        %v1151 = vpack.c.bf16 %v1143, %v1143
        %v1152 = vld [vmem:[#allocation4] sm:$0xff]
        %v1153 = vld [vmem:[#allocation4 + $0x8] sm:$0xff]
        %v1154 = vld [vmem:[#allocation4 + $0x10] sm:$0xff]
        %v1155 = vld [vmem:[#allocation4 + $0x18] sm:$0xff]
        %v1156 = vld [vmem:[#allocation4 + $0x20] sm:$0xff]
        %v1157 = vld [vmem:[#allocation4 + $0x28] sm:$0xff]
        %v1158 = vld [vmem:[#allocation4 + $0x30] sm:$0xff]
        %v1159 = vld [vmem:[#allocation4 + $0x38] sm:$0xff]
        %v1160 = vpack.c.bf16 %v1152, %v1152
        %v1161 = vpack.c.bf16 %v1153, %v1153
        %v1162 = vpack.c.bf16 %v1154, %v1154
        %v1163 = vpack.c.bf16 %v1155, %v1155
        %v1164 = vpack.c.bf16 %v1156, %v1156
        %v1165 = vpack.c.bf16 %v1157, %v1157
        %v1166 = vpack.c.bf16 %v1158, %v1158
        %v1167 = vpack.c.bf16 %v1159, %v1159
        %v1170 = vunpack.c.l.b16 %v1144
        %v1171 = vunpack.c.l.b16 %v1145
        %v1172 = vpack.c.b16 %v1171, %v1170
        %v1174 = vsel %vm1048, %v1132, 0
        %v1177 = vsel %vm1048, %v1172, 0
        %1179 = vmatpush.bf16.xpose.msra.mxu0 0
        %1180 = vmatpush.bf16.xpose.msra.mxu0 0
        %1181 = vmatpush.bf16.xpose.msra.mxu0 0
        %1182 = vmatpush.bf16.xpose.msra.mxu0 0
        %1183 = vmatpush.bf16.xpose.msra.mxu0 0
        %1184 = vmatpush.bf16.xpose.msra.mxu0 0
        %1185 = vmatpush.bf16.xpose.msra.mxu0 0
        %1186 = vmatpush.bf16.xpose.msra.mxu0 %v1177
        %1187 = vmatmul.bf16.gmra.mxu0 %v1174
        %v1188 = vpop.f32.mrf.mxu0
        %v1189 = vadd.f32 0.0, %v1188
        %v1190 = vpop.f32.mrf.mxu0
        %1191 = vdwg.mxu0
        %v1194 = vunpack.c.l.b16 %v1146
        %v1195 = vunpack.c.l.b16 %v1147
        %v1196 = vpack.c.b16 %v1195, %v1194
        %v1198 = vsel %vm1048, %v1133, 0
        %v1201 = vsel %vm1048, %v1196, 0
        %1203 = vmatpush.bf16.xpose.msra.mxu0 0
        %1204 = vmatpush.bf16.xpose.msra.mxu0 0
        %1205 = vmatpush.bf16.xpose.msra.mxu0 0
        %1206 = vmatpush.bf16.xpose.msra.mxu0 0
        %1207 = vmatpush.bf16.xpose.msra.mxu0 0
        %1208 = vmatpush.bf16.xpose.msra.mxu0 0
        %1209 = vmatpush.bf16.xpose.msra.mxu0 0
        %1210 = vmatpush.bf16.xpose.msra.mxu0 %v1201
        %1211 = vmatmul.bf16.gmra.mxu0 %v1198
        %v1212 = vpop.f32.mrf.mxu0
        %v1213 = vadd.f32 0.0, %v1212
        %v1214 = vpop.f32.mrf.mxu0
        %1215 = vdwg.mxu0
        %v1218 = vunpack.c.l.b16 %v1148
        %v1219 = vunpack.c.l.b16 %v1149
        %v1220 = vpack.c.b16 %v1219, %v1218
        %v1222 = vsel %vm1048, %v1134, 0
        %v1225 = vsel %vm1048, %v1220, 0
        %1227 = vmatpush.bf16.xpose.msra.mxu0 0
        %1228 = vmatpush.bf16.xpose.msra.mxu0 0
        %1229 = vmatpush.bf16.xpose.msra.mxu0 0
        %1230 = vmatpush.bf16.xpose.msra.mxu0 0
        %1231 = vmatpush.bf16.xpose.msra.mxu0 0
        %1232 = vmatpush.bf16.xpose.msra.mxu0 0
        %1233 = vmatpush.bf16.xpose.msra.mxu0 0
        %1234 = vmatpush.bf16.xpose.msra.mxu0 %v1225
        %1235 = vmatmul.bf16.gmra.mxu0 %v1222
        %v1236 = vpop.f32.mrf.mxu0
        %v1237 = vadd.f32 0.0, %v1236
        %v1238 = vpop.f32.mrf.mxu0
        %1239 = vdwg.mxu0
        %v1242 = vunpack.c.l.b16 %v1150
        %v1243 = vunpack.c.l.b16 %v1151
        %v1244 = vpack.c.b16 %v1243, %v1242
        %v1246 = vsel %vm1048, %v1135, 0
        %v1249 = vsel %vm1048, %v1244, 0
        %1251 = vmatpush.bf16.xpose.msra.mxu0 0
        %1252 = vmatpush.bf16.xpose.msra.mxu0 0
        %1253 = vmatpush.bf16.xpose.msra.mxu0 0
        %1254 = vmatpush.bf16.xpose.msra.mxu0 0
        %1255 = vmatpush.bf16.xpose.msra.mxu0 0
        %1256 = vmatpush.bf16.xpose.msra.mxu0 0
        %1257 = vmatpush.bf16.xpose.msra.mxu0 0
        %1258 = vmatpush.bf16.xpose.msra.mxu0 %v1249
        %1259 = vmatmul.bf16.gmra.mxu0 %v1246
        %v1260 = vpop.f32.mrf.mxu0
        %v1261 = vadd.f32 0.0, %v1260
        %v1262 = vpop.f32.mrf.mxu0
        %1263 = vdwg.mxu0
        %vm1264 = vcmask 130048
        %v1265 = vsel %vm1264, %v1189, -inf
        %1266 = vmax.xlane.f32.xlu0 %v1265
        %v1267 = vpop.xlane.xlu0 %1266
        %v1268 = vsel %vm1264, %v1213, -inf
        %1269 = vmax.xlane.f32.xlu0 %v1268
        %v1270 = vpop.xlane.xlu0 %1269
        %v1271 = vsel %vm1264, %v1237, -inf
        %1272 = vmax.xlane.f32.xlu0 %v1271
        %v1273 = vpop.xlane.xlu0 %1272
        %v1274 = vsel %vm1264, %v1261, -inf
        %1275 = vmax.xlane.f32.xlu0 %v1274
        %v1276 = vpop.xlane.xlu0 %1275
        %v1277 = vsub.f32 %v1189, %v1267
        %v1278 = vsub.f32 %v1213, %v1270
        %v1279 = vsub.f32 %v1237, %v1273
        %v1280 = vsub.f32 %v1261, %v1276
        %v1281 = vmul.f32 %v1277, 1.442695
        %v1282 = vpow.pop %v1281
        %v1283 = vmul.f32 %v1278, 1.442695
        %v1284 = vpow.pop %v1283
        %v1285 = vmul.f32 %v1279, 1.442695
        %v1286 = vpow.pop %v1285
        %v1287 = vmul.f32 %v1280, 1.442695
        %v1288 = vpow.pop %v1287
        %v1289 = vsel %vm1264, %v1282, 0.0
        %1290 = vadd.xlane.f32.xlu0 %v1289
        %v1291 = vpop.xlane.xlu0 %1290
        %v1292 = vsel %vm1264, %v1284, 0.0
        %1293 = vadd.xlane.f32.xlu0 %v1292
        %v1294 = vpop.xlane.xlu0 %1293
        %v1295 = vsel %vm1264, %v1286, 0.0
        %1296 = vadd.xlane.f32.xlu0 %v1295
        %v1297 = vpop.xlane.xlu0 %1296
        %v1298 = vsel %vm1264, %v1288, 0.0
        %1299 = vadd.xlane.f32.xlu0 %v1298
        %v1300 = vpop.xlane.xlu0 %1299
        %v1301 = vrcp.pop %v1291
        %v1302 = vrcp.pop %v1294
        %v1303 = vrcp.pop %v1297
        %v1304 = vrcp.pop %v1300
        %v1305 = vmul.f32 %v1282, %v1301
        %v1306 = vmul.f32 %v1284, %v1302
        %v1307 = vmul.f32 %v1286, %v1303
        %v1308 = vmul.f32 %v1288, %v1304
        %1309 = vst.msk [vmem:[%s749] sm:$0xff] %vm1264, %v1305
        %1310 = vst.msk [vmem:[%s749 + $0x8] sm:$0xff] %vm1264, %v1306
        %1311 = vst.msk [vmem:[%s749 + $0x10] sm:$0xff] %vm1264, %v1307
        %1312 = vst.msk [vmem:[%s749 + $0x18] sm:$0xff] %vm1264, %v1308
        %v1313 = vpack.c.bf16 %v1305, %v1305
        %v1314 = vpack.c.bf16 %v1306, %v1306
        %v1315 = vpack.c.bf16 %v1307, %v1307
        %v1316 = vpack.c.bf16 %v1308, %v1308
        %v1319 = vunpack.c.l.b16 %v1160
        %v1320 = vunpack.c.l.b16 %v1161
        %v1321 = vpack.c.b16 %v1320, %v1319
        %v1324 = vsel %vm1264, %v1313, 0
        %1326 = vmatpush.bf16.msra.mxu0 0
        %1327 = vmatpush.bf16.msra.mxu0 0
        %1328 = vmatpush.bf16.msra.mxu0 0
        %1329 = vmatpush.bf16.msra.mxu0 0
        %1330 = vmatpush.bf16.msra.mxu0 0
        %1331 = vmatpush.bf16.msra.mxu0 0
        %1332 = vmatpush.bf16.msra.mxu0 0
        %1333 = vmatpush.bf16.msra.mxu0 %v1321
        %1334 = vmatmul.bf16.gmra.mxu0 %v1324
        %v1335 = vpop.f32.mrf.mxu0
        %v1336 = vadd.f32 0.0, %v1335
        %v1337 = vpop.f32.mrf.mxu0
        %1338 = vdwg.mxu0
        %v1341 = vunpack.c.l.b16 %v1162
        %v1342 = vunpack.c.l.b16 %v1163
        %v1343 = vpack.c.b16 %v1342, %v1341
        %v1346 = vsel %vm1264, %v1314, 0
        %1348 = vmatpush.bf16.msra.mxu0 0
        %1349 = vmatpush.bf16.msra.mxu0 0
        %1350 = vmatpush.bf16.msra.mxu0 0
        %1351 = vmatpush.bf16.msra.mxu0 0
        %1352 = vmatpush.bf16.msra.mxu0 0
        %1353 = vmatpush.bf16.msra.mxu0 0
        %1354 = vmatpush.bf16.msra.mxu0 0
        %1355 = vmatpush.bf16.msra.mxu0 %v1343
        %1356 = vmatmul.bf16.gmra.mxu0 %v1346
        %v1357 = vpop.f32.mrf.mxu0
        %v1358 = vadd.f32 0.0, %v1357
        %v1359 = vpop.f32.mrf.mxu0
        %1360 = vdwg.mxu0
        %v1363 = vunpack.c.l.b16 %v1164
        %v1364 = vunpack.c.l.b16 %v1165
        %v1365 = vpack.c.b16 %v1364, %v1363
        %v1368 = vsel %vm1264, %v1315, 0
        %1370 = vmatpush.bf16.msra.mxu0 0
        %1371 = vmatpush.bf16.msra.mxu0 0
        %1372 = vmatpush.bf16.msra.mxu0 0
        %1373 = vmatpush.bf16.msra.mxu0 0
        %1374 = vmatpush.bf16.msra.mxu0 0
        %1375 = vmatpush.bf16.msra.mxu0 0
        %1376 = vmatpush.bf16.msra.mxu0 0
        %1377 = vmatpush.bf16.msra.mxu0 %v1365
        %1378 = vmatmul.bf16.gmra.mxu0 %v1368
        %v1379 = vpop.f32.mrf.mxu0
        %v1380 = vadd.f32 0.0, %v1379
        %v1381 = vpop.f32.mrf.mxu0
        %1382 = vdwg.mxu0
        %v1385 = vunpack.c.l.b16 %v1166
        %v1386 = vunpack.c.l.b16 %v1167
        %v1387 = vpack.c.b16 %v1386, %v1385
        %v1390 = vsel %vm1264, %v1316, 0
        %1392 = vmatpush.bf16.msra.mxu0 0
        %1393 = vmatpush.bf16.msra.mxu0 0
        %1394 = vmatpush.bf16.msra.mxu0 0
        %1395 = vmatpush.bf16.msra.mxu0 0
        %1396 = vmatpush.bf16.msra.mxu0 0
        %1397 = vmatpush.bf16.msra.mxu0 0
        %1398 = vmatpush.bf16.msra.mxu0 0
        %1399 = vmatpush.bf16.msra.mxu0 %v1387
        %1400 = vmatmul.bf16.gmra.mxu0 %v1390
        %v1401 = vpop.f32.mrf.mxu0
        %v1402 = vadd.f32 0.0, %v1401
        %v1403 = vpop.f32.mrf.mxu0
        %1404 = vdwg.mxu0
        %1405 = vst.msk [vmem:[#allocation5] sm:$0xff] %vm1048, %v1336
        %1407 = vrot.lane.b32.xlu0 %v1358, 32
        %v1408 = vpop.permute.xlu0 %1407
        %vm1410 = vcmask 523520
        %1411 = vst.msk [vmem:[#allocation5] sm:$0xff] %vm1410, %v1408
        %1413 = vrot.lane.b32.xlu0 %v1380, 64
        %v1414 = vpop.permute.xlu0 %1413
        %vm1416 = vcmask 785920
        %1417 = vst.msk [vmem:[#allocation5] sm:$0xff] %vm1416, %v1414
        %1419 = vrot.lane.b32.xlu0 %v1402, 96
        %v1420 = vpop.permute.xlu0 %1419
        %vm1422 = vcmask 1048320
        %1423 = vst.msk [vmem:[#allocation5] sm:$0xff] %vm1422, %v1420
        %v1424 = vld [vmem:[#allocation5] sm:$0xff]
        %v1425 = vpack.c.bf16 %v1424, %v1424
        %v1426 = vld [vmem:[#allocation17] sm:$0xf]
        %v1427 = vld [vmem:[#allocation17 + $0x4] sm:$0xf]
        %v1428 = vld [vmem:[#allocation17 + $0x8] sm:$0xf]
        %v1429 = vld [vmem:[#allocation17 + $0xc] sm:$0xf]
        %v1430 = vld [vmem:[#allocation17 + $0x10] sm:$0xf]
        %v1431 = vld [vmem:[#allocation17 + $0x14] sm:$0xf]
        %v1432 = vld [vmem:[#allocation17 + $0x18] sm:$0xf]
        %v1433 = vld [vmem:[#allocation17 + $0x1c] sm:$0xf]
        %v1434 = vld [vmem:[#allocation17 + $0x20] sm:$0xf]
        %v1435 = vld [vmem:[#allocation17 + $0x24] sm:$0xf]
        %v1436 = vld [vmem:[#allocation17 + $0x28] sm:$0xf]
        %v1437 = vld [vmem:[#allocation17 + $0x2c] sm:$0xf]
        %v1438 = vld [vmem:[#allocation17 + $0x30] sm:$0xf]
        %v1439 = vld [vmem:[#allocation17 + $0x34] sm:$0xf]
        %v1440 = vld [vmem:[#allocation17 + $0x38] sm:$0xf]
        %v1441 = vld [vmem:[#allocation17 + $0x3c] sm:$0xf]
        %v1442 = vld [vmem:[%s9] sm:$0x1]
        %v1444 = vperm.slane %v1442, 0
        %v1462 = vunpack.c.l.b16 %v1426
        %v1463 = vunpack.c.l.b16 %v1427
        %v1464 = vunpack.c.l.b16 %v1428
        %v1465 = vunpack.c.l.b16 %v1429
        %v1466 = vunpack.c.l.b16 %v1430
        %v1467 = vunpack.c.l.b16 %v1431
        %v1468 = vunpack.c.l.b16 %v1432
        %v1469 = vunpack.c.l.b16 %v1433
        %v1470 = vunpack.c.l.b16 %v1434
        %v1471 = vunpack.c.l.b16 %v1435
        %v1472 = vunpack.c.l.b16 %v1436
        %v1473 = vunpack.c.l.b16 %v1437
        %v1474 = vunpack.c.l.b16 %v1438
        %v1475 = vunpack.c.l.b16 %v1439
        %v1476 = vunpack.c.l.b16 %v1440
        %v1477 = vunpack.c.l.b16 %v1441
        %v1478 = vpack.c.b16 %v1463, %v1462
        %v1479 = vpack.c.b16 %v1465, %v1464
        %v1480 = vpack.c.b16 %v1467, %v1466
        %v1481 = vpack.c.b16 %v1469, %v1468
        %v1482 = vpack.c.b16 %v1471, %v1470
        %v1483 = vpack.c.b16 %v1473, %v1472
        %v1484 = vpack.c.b16 %v1475, %v1474
        %v1485 = vpack.c.b16 %v1477, %v1476
        %1494 = vmatpush.bf16.msra.mxu0 %v1485
        %1495 = vmatpush.bf16.msra.mxu0 %v1484
        %1496 = vmatpush.bf16.msra.mxu0 %v1483
        %1497 = vmatpush.bf16.msra.mxu0 %v1482
        %1498 = vmatpush.bf16.msra.mxu0 %v1481
        %1499 = vmatpush.bf16.msra.mxu0 %v1480
        %1500 = vmatpush.bf16.msra.mxu0 %v1479
        %1501 = vmatpush.bf16.msra.mxu0 %v1478
        %1502 = vmatmul.bf16.gmra.mxu0 %v1425
        %v1503 = vpop.f32.mrf.mxu0
        %v1504 = vadd.f32 %v1444, %v1503
        %v1505 = vpop.f32.mrf.mxu0
        %1506 = vdwg.mxu0
        %v1507 = vadd.f32 %v751, %v1504
        %1508 = vadd.xlane.f32.xlu0 %v1507
        %v1509 = vpop.xlane.xlu0 %1508
        %v1510 = vmul.f32 %v1509, %v762
        %v1511 = vsub.f32 %v1507, %v1510
        %v1512 = vmul.f32 %v1511, %v1511
        %1513 = vadd.xlane.f32.xlu0 %v1512
        %v1514 = vpop.xlane.xlu0 %1513
        %v1515 = vmul.f32 %v1514, %v762
        %v1516 = vadd.f32 %v1515, 1e-05
        %v1517 = vrsqrt.pop %v1516
        %v1518 = vmul.f32 %v1517, %v1516
        %v1519 = vmul.f32 %v1518, %v1517
        %v1520 = vmul.f32 0.5, %v1519
        %v1521 = vsub.f32 1.5, %v1520
        %v1522 = vmul.f32 %v1517, %v1521
        %vm1523 = vweird.f32 %v1516
        %vm1524 = vweird.f32 %v1517
        %vm1525 = vmor %vm1523, %vm1524
        %v1526 = vsel %vm1525, %v1517, %v1522
        %v1527 = vmul.f32 %v1511, %v1526
        %v1528 = vld [vmem:[%s10] sm:$0x1]
        %v1530 = vperm.slane %v1528, 0
        %v1532 = vmul.f32 %v1527, %v1530
        %v1533 = vld [vmem:[%s11] sm:$0x1]
        %v1535 = vperm.slane %v1533, 0
        %v1537 = vadd.f32 %v1532, %v1535
        %v1538 = vpack.c.bf16 %v1537, %v1537
        %v1539 = vld [vmem:[#allocation18] sm:$0xff]
        %v1540 = vld [vmem:[#allocation18 + $0x8] sm:$0xff]
        %v1541 = vld [vmem:[#allocation18 + $0x10] sm:$0xff]
        %v1542 = vld [vmem:[#allocation18 + $0x18] sm:$0xff]
        %v1543 = vld [vmem:[#allocation18 + $0x20] sm:$0xff]
        %v1544 = vld [vmem:[#allocation18 + $0x28] sm:$0xff]
        %v1545 = vld [vmem:[#allocation18 + $0x30] sm:$0xff]
        %v1546 = vld [vmem:[#allocation18 + $0x38] sm:$0xff]
        %v1547 = vld [vmem:[#allocation18 + $0x40] sm:$0xff]
        %v1548 = vld [vmem:[#allocation18 + $0x48] sm:$0xff]
        %v1549 = vld [vmem:[#allocation18 + $0x50] sm:$0xff]
        %v1550 = vld [vmem:[#allocation18 + $0x58] sm:$0xff]
        %v1551 = vld [vmem:[#allocation18 + $0x60] sm:$0xff]
        %v1552 = vld [vmem:[#allocation18 + $0x68] sm:$0xff]
        %v1553 = vld [vmem:[#allocation18 + $0x70] sm:$0xff]
        %v1554 = vld [vmem:[#allocation18 + $0x78] sm:$0xff]
        %v1555 = vld [vmem:[#allocation18 + $0x80] sm:$0xff]
        %v1556 = vld [vmem:[#allocation18 + $0x88] sm:$0xff]
        %v1557 = vld [vmem:[#allocation18 + $0x90] sm:$0xff]
        %v1558 = vld [vmem:[#allocation18 + $0x98] sm:$0xff]
        %v1559 = vld [vmem:[#allocation18 + $0xa0] sm:$0xff]
        %v1560 = vld [vmem:[#allocation18 + $0xa8] sm:$0xff]
        %v1561 = vld [vmem:[#allocation18 + $0xb0] sm:$0xff]
        %v1562 = vld [vmem:[#allocation18 + $0xb8] sm:$0xff]
        %v1563 = vld [vmem:[#allocation18 + $0xc0] sm:$0xff]
        %v1564 = vld [vmem:[#allocation18 + $0xc8] sm:$0xff]
        %v1565 = vld [vmem:[#allocation18 + $0xd0] sm:$0xff]
        %v1566 = vld [vmem:[#allocation18 + $0xd8] sm:$0xff]
        %v1567 = vld [vmem:[#allocation18 + $0xe0] sm:$0xff]
        %v1568 = vld [vmem:[#allocation18 + $0xe8] sm:$0xff]
        %v1569 = vld [vmem:[#allocation18 + $0xf0] sm:$0xff]
        %v1570 = vld [vmem:[#allocation18 + $0xf8] sm:$0xff]
        %v1571 = vld [vmem:[%s13] sm:$0xf]
        %v1573 = vperm.slane %v1571, 0
        %v1574 = vperm.slane %v1571, 1
        %v1575 = vperm.slane %v1571, 2
        %v1576 = vperm.slane %v1571, 3
        %v1613 = vunpack.c.l.b16 %v1539
        %v1614 = vunpack.c.h.b16 %v1539
        %v1615 = vunpack.c.l.b16 %v1540
        %v1616 = vunpack.c.h.b16 %v1540
        %v1617 = vunpack.c.l.b16 %v1541
        %v1618 = vunpack.c.h.b16 %v1541
        %v1619 = vunpack.c.l.b16 %v1542
        %v1620 = vunpack.c.h.b16 %v1542
        %v1621 = vunpack.c.l.b16 %v1543
        %v1622 = vunpack.c.h.b16 %v1543
        %v1623 = vunpack.c.l.b16 %v1544
        %v1624 = vunpack.c.h.b16 %v1544
        %v1625 = vunpack.c.l.b16 %v1545
        %v1626 = vunpack.c.h.b16 %v1545
        %v1627 = vunpack.c.l.b16 %v1546
        %v1628 = vunpack.c.h.b16 %v1546
        %v1629 = vunpack.c.l.b16 %v1547
        %v1630 = vunpack.c.h.b16 %v1547
        %v1631 = vunpack.c.l.b16 %v1548
        %v1632 = vunpack.c.h.b16 %v1548
        %v1633 = vunpack.c.l.b16 %v1549
        %v1634 = vunpack.c.h.b16 %v1549
        %v1635 = vunpack.c.l.b16 %v1550
        %v1636 = vunpack.c.h.b16 %v1550
        %v1637 = vunpack.c.l.b16 %v1551
        %v1638 = vunpack.c.h.b16 %v1551
        %v1639 = vunpack.c.l.b16 %v1552
        %v1640 = vunpack.c.h.b16 %v1552
        %v1641 = vunpack.c.l.b16 %v1553
        %v1642 = vunpack.c.h.b16 %v1553
        %v1643 = vunpack.c.l.b16 %v1554
        %v1644 = vunpack.c.h.b16 %v1554
        %v1645 = vunpack.c.l.b16 %v1555
        %v1646 = vunpack.c.h.b16 %v1555
        %v1647 = vunpack.c.l.b16 %v1556
        %v1648 = vunpack.c.h.b16 %v1556
        %v1649 = vunpack.c.l.b16 %v1557
        %v1650 = vunpack.c.h.b16 %v1557
        %v1651 = vunpack.c.l.b16 %v1558
        %v1652 = vunpack.c.h.b16 %v1558
        %v1653 = vunpack.c.l.b16 %v1559
        %v1654 = vunpack.c.h.b16 %v1559
        %v1655 = vunpack.c.l.b16 %v1560
        %v1656 = vunpack.c.h.b16 %v1560
        %v1657 = vunpack.c.l.b16 %v1561
        %v1658 = vunpack.c.h.b16 %v1561
        %v1659 = vunpack.c.l.b16 %v1562
        %v1660 = vunpack.c.h.b16 %v1562
        %v1661 = vunpack.c.l.b16 %v1563
        %v1662 = vunpack.c.h.b16 %v1563
        %v1663 = vunpack.c.l.b16 %v1564
        %v1664 = vunpack.c.h.b16 %v1564
        %v1665 = vunpack.c.l.b16 %v1565
        %v1666 = vunpack.c.h.b16 %v1565
        %v1667 = vunpack.c.l.b16 %v1566
        %v1668 = vunpack.c.h.b16 %v1566
        %v1669 = vunpack.c.l.b16 %v1567
        %v1670 = vunpack.c.h.b16 %v1567
        %v1671 = vunpack.c.l.b16 %v1568
        %v1672 = vunpack.c.h.b16 %v1568
        %v1673 = vunpack.c.l.b16 %v1569
        %v1674 = vunpack.c.h.b16 %v1569
        %v1675 = vunpack.c.l.b16 %v1570
        %v1676 = vunpack.c.h.b16 %v1570
        %v1677 = vpack.c.b16 %v1617, %v1613
        %v1678 = vpack.c.b16 %v1618, %v1614
        %v1679 = vpack.c.b16 %v1619, %v1615
        %v1680 = vpack.c.b16 %v1620, %v1616
        %v1681 = vpack.c.b16 %v1625, %v1621
        %v1682 = vpack.c.b16 %v1626, %v1622
        %v1683 = vpack.c.b16 %v1627, %v1623
        %v1684 = vpack.c.b16 %v1628, %v1624
        %v1685 = vpack.c.b16 %v1633, %v1629
        %v1686 = vpack.c.b16 %v1634, %v1630
        %v1687 = vpack.c.b16 %v1635, %v1631
        %v1688 = vpack.c.b16 %v1636, %v1632
        %v1689 = vpack.c.b16 %v1641, %v1637
        %v1690 = vpack.c.b16 %v1642, %v1638
        %v1691 = vpack.c.b16 %v1643, %v1639
        %v1692 = vpack.c.b16 %v1644, %v1640
        %v1693 = vpack.c.b16 %v1649, %v1645
        %v1694 = vpack.c.b16 %v1650, %v1646
        %v1695 = vpack.c.b16 %v1651, %v1647
        %v1696 = vpack.c.b16 %v1652, %v1648
        %v1697 = vpack.c.b16 %v1657, %v1653
        %v1698 = vpack.c.b16 %v1658, %v1654
        %v1699 = vpack.c.b16 %v1659, %v1655
        %v1700 = vpack.c.b16 %v1660, %v1656
        %v1701 = vpack.c.b16 %v1665, %v1661
        %v1702 = vpack.c.b16 %v1666, %v1662
        %v1703 = vpack.c.b16 %v1667, %v1663
        %v1704 = vpack.c.b16 %v1668, %v1664
        %v1705 = vpack.c.b16 %v1673, %v1669
        %v1706 = vpack.c.b16 %v1674, %v1670
        %v1707 = vpack.c.b16 %v1675, %v1671
        %v1708 = vpack.c.b16 %v1676, %v1672
        %1741 = vmatpush.bf16.msra.mxu0 %v1705
        %1742 = vmatpush.bf16.msra.mxu0 %v1701
        %1743 = vmatpush.bf16.msra.mxu0 %v1697
        %1744 = vmatpush.bf16.msra.mxu0 %v1693
        %1745 = vmatpush.bf16.msra.mxu0 %v1689
        %1746 = vmatpush.bf16.msra.mxu0 %v1685
        %1747 = vmatpush.bf16.msra.mxu0 %v1681
        %1748 = vmatpush.bf16.msra.mxu0 %v1677
        %1749 = vmatmul.bf16.gmra.mxu0 %v1538
        %v1750 = vpop.f32.mrf.mxu0
        %v1751 = vadd.f32 %v1573, %v1750
        %v1752 = vpop.f32.mrf.mxu0
        %1753 = vdwg.mxu0
        %1754 = vmatpush.bf16.msra.mxu0 %v1706
        %1755 = vmatpush.bf16.msra.mxu0 %v1702
        %1756 = vmatpush.bf16.msra.mxu0 %v1698
        %1757 = vmatpush.bf16.msra.mxu0 %v1694
        %1758 = vmatpush.bf16.msra.mxu0 %v1690
        %1759 = vmatpush.bf16.msra.mxu0 %v1686
        %1760 = vmatpush.bf16.msra.mxu0 %v1682
        %1761 = vmatpush.bf16.msra.mxu0 %v1678
        %1762 = vmatmul.bf16.gmra.mxu0 %v1538
        %v1763 = vpop.f32.mrf.mxu0
        %v1764 = vadd.f32 %v1574, %v1763
        %v1765 = vpop.f32.mrf.mxu0
        %1766 = vdwg.mxu0
        %1767 = vmatpush.bf16.msra.mxu0 %v1707
        %1768 = vmatpush.bf16.msra.mxu0 %v1703
        %1769 = vmatpush.bf16.msra.mxu0 %v1699
        %1770 = vmatpush.bf16.msra.mxu0 %v1695
        %1771 = vmatpush.bf16.msra.mxu0 %v1691
        %1772 = vmatpush.bf16.msra.mxu0 %v1687
        %1773 = vmatpush.bf16.msra.mxu0 %v1683
        %1774 = vmatpush.bf16.msra.mxu0 %v1679
        %1775 = vmatmul.bf16.gmra.mxu0 %v1538
        %v1776 = vpop.f32.mrf.mxu0
        %v1777 = vadd.f32 %v1575, %v1776
        %v1778 = vpop.f32.mrf.mxu0
        %1779 = vdwg.mxu0
        %1780 = vmatpush.bf16.msra.mxu0 %v1708
        %1781 = vmatpush.bf16.msra.mxu0 %v1704
        %1782 = vmatpush.bf16.msra.mxu0 %v1700
        %1783 = vmatpush.bf16.msra.mxu0 %v1696
        %1784 = vmatpush.bf16.msra.mxu0 %v1692
        %1785 = vmatpush.bf16.msra.mxu0 %v1688
        %1786 = vmatpush.bf16.msra.mxu0 %v1684
        %1787 = vmatpush.bf16.msra.mxu0 %v1680
        %1788 = vmatmul.bf16.gmra.mxu0 %v1538
        %v1789 = vpop.f32.mrf.mxu0
        %v1790 = vadd.f32 %v1576, %v1789
        %v1791 = vpop.f32.mrf.mxu0
        %1792 = vdwg.mxu0
        %v1793 = vmul.f32 %v1751, 1.702
        %v1794 = vmul.f32 %v1764, 1.702
        %v1795 = vmul.f32 %v1777, 1.702
        %v1796 = vmul.f32 %v1790, 1.702
        %v1797 = vxor.u32 %v1793, 2147483648
        %v1798 = vxor.u32 %v1794, 2147483648
        %v1799 = vxor.u32 %v1795, 2147483648
        %v1800 = vxor.u32 %v1796, 2147483648
        %v1801 = vmul.f32 %v1797, 1.442695
        %v1802 = vpow.pop %v1801
        %v1803 = vmul.f32 %v1798, 1.442695
        %v1804 = vpow.pop %v1803
        %v1805 = vmul.f32 %v1799, 1.442695
        %v1806 = vpow.pop %v1805
        %v1807 = vmul.f32 %v1800, 1.442695
        %v1808 = vpow.pop %v1807
        %v1809 = vadd.f32 %v1802, 1.0
        %v1810 = vadd.f32 %v1804, 1.0
        %v1811 = vadd.f32 %v1806, 1.0
        %v1812 = vadd.f32 %v1808, 1.0
        %v1813 = vrcp.pop %v1809
        %v1814 = vmul.f32 %v1809, %v1813
        %v1815 = vsub.f32 1.0, %v1814
        %v1816 = vmul.f32 %v1813, %v1815
        %v1817 = vadd.f32 %v1813, %v1816
        %vm1818 = vweird.f32 %v1809
        %vm1819 = vweird.f32 %v1813
        %vm1820 = vmor %vm1818, %vm1819
        %v1821 = vsel %vm1820, %v1813, %v1817
        %v1822 = vand.u32 2147483647, %v1809
        %vm1823 = vcmp.eq.f32.partialorder %v1822, 8.507059e+37
        %v1824 = vand.u32 %v1809, 2147483648
        %v1825 = vor.u32 1.1754944e-38, %v1824
        %v1826 = vsel %vm1823, %v1825, %v1821
        %v1827 = vmul.f32 1.0, %v1826
        %v1828 = vrcp.pop %v1810
        %v1829 = vmul.f32 %v1810, %v1828
        %v1830 = vsub.f32 1.0, %v1829
        %v1831 = vmul.f32 %v1828, %v1830
        %v1832 = vadd.f32 %v1828, %v1831
        %vm1833 = vweird.f32 %v1810
        %vm1834 = vweird.f32 %v1828
        %vm1835 = vmor %vm1833, %vm1834
        %v1836 = vsel %vm1835, %v1828, %v1832
        %v1837 = vand.u32 2147483647, %v1810
        %vm1838 = vcmp.eq.f32.partialorder %v1837, 8.507059e+37
        %v1839 = vand.u32 %v1810, 2147483648
        %v1840 = vor.u32 1.1754944e-38, %v1839
        %v1841 = vsel %vm1838, %v1840, %v1836
        %v1842 = vmul.f32 1.0, %v1841
        %v1843 = vrcp.pop %v1811
        %v1844 = vmul.f32 %v1811, %v1843
        %v1845 = vsub.f32 1.0, %v1844
        %v1846 = vmul.f32 %v1843, %v1845
        %v1847 = vadd.f32 %v1843, %v1846
        %vm1848 = vweird.f32 %v1811
        %vm1849 = vweird.f32 %v1843
        %vm1850 = vmor %vm1848, %vm1849
        %v1851 = vsel %vm1850, %v1843, %v1847
        %v1852 = vand.u32 2147483647, %v1811
        %vm1853 = vcmp.eq.f32.partialorder %v1852, 8.507059e+37
        %v1854 = vand.u32 %v1811, 2147483648
        %v1855 = vor.u32 1.1754944e-38, %v1854
        %v1856 = vsel %vm1853, %v1855, %v1851
        %v1857 = vmul.f32 1.0, %v1856
        %v1858 = vrcp.pop %v1812
        %v1859 = vmul.f32 %v1812, %v1858
        %v1860 = vsub.f32 1.0, %v1859
        %v1861 = vmul.f32 %v1858, %v1860
        %v1862 = vadd.f32 %v1858, %v1861
        %vm1863 = vweird.f32 %v1812
        %vm1864 = vweird.f32 %v1858
        %vm1865 = vmor %vm1863, %vm1864
        %v1866 = vsel %vm1865, %v1858, %v1862
        %v1867 = vand.u32 2147483647, %v1812
        %vm1868 = vcmp.eq.f32.partialorder %v1867, 8.507059e+37
        %v1869 = vand.u32 %v1812, 2147483648
        %v1870 = vor.u32 1.1754944e-38, %v1869
        %v1871 = vsel %vm1868, %v1870, %v1866
        %v1872 = vmul.f32 1.0, %v1871
        %v1873 = vmul.f32 %v1751, %v1827
        %v1874 = vmul.f32 %v1764, %v1842
        %v1875 = vmul.f32 %v1777, %v1857
        %v1876 = vmul.f32 %v1790, %v1872
        %v1877 = vpack.c.bf16 %v1873, %v1873
        %v1878 = vpack.c.bf16 %v1874, %v1874
        %v1879 = vpack.c.bf16 %v1875, %v1875
        %v1880 = vpack.c.bf16 %v1876, %v1876
        %v1881 = vld [vmem:[#allocation20] sm:$0xf]
        %v1882 = vld [vmem:[#allocation20 + $0x4] sm:$0xf]
        %v1883 = vld [vmem:[#allocation20 + $0x8] sm:$0xf]
        %v1884 = vld [vmem:[#allocation20 + $0xc] sm:$0xf]
        %v1885 = vld [vmem:[#allocation20 + $0x10] sm:$0xf]
        %v1886 = vld [vmem:[#allocation20 + $0x14] sm:$0xf]
        %v1887 = vld [vmem:[#allocation20 + $0x18] sm:$0xf]
        %v1888 = vld [vmem:[#allocation20 + $0x1c] sm:$0xf]
        %v1889 = vld [vmem:[#allocation20 + $0x20] sm:$0xf]
        %v1890 = vld [vmem:[#allocation20 + $0x24] sm:$0xf]
        %v1891 = vld [vmem:[#allocation20 + $0x28] sm:$0xf]
        %v1892 = vld [vmem:[#allocation20 + $0x2c] sm:$0xf]
        %v1893 = vld [vmem:[#allocation20 + $0x30] sm:$0xf]
        %v1894 = vld [vmem:[#allocation20 + $0x34] sm:$0xf]
        %v1895 = vld [vmem:[#allocation20 + $0x38] sm:$0xf]
        %v1896 = vld [vmem:[#allocation20 + $0x3c] sm:$0xf]
        %v1897 = vld [vmem:[#allocation20 + $0x40] sm:$0xf]
        %v1898 = vld [vmem:[#allocation20 + $0x44] sm:$0xf]
        %v1899 = vld [vmem:[#allocation20 + $0x48] sm:$0xf]
        %v1900 = vld [vmem:[#allocation20 + $0x4c] sm:$0xf]
        %v1901 = vld [vmem:[#allocation20 + $0x50] sm:$0xf]
        %v1902 = vld [vmem:[#allocation20 + $0x54] sm:$0xf]
        %v1903 = vld [vmem:[#allocation20 + $0x58] sm:$0xf]
        %v1904 = vld [vmem:[#allocation20 + $0x5c] sm:$0xf]
        %v1905 = vld [vmem:[#allocation20 + $0x60] sm:$0xf]
        %v1906 = vld [vmem:[#allocation20 + $0x64] sm:$0xf]
        %v1907 = vld [vmem:[#allocation20 + $0x68] sm:$0xf]
        %v1908 = vld [vmem:[#allocation20 + $0x6c] sm:$0xf]
        %v1909 = vld [vmem:[#allocation20 + $0x70] sm:$0xf]
        %v1910 = vld [vmem:[#allocation20 + $0x74] sm:$0xf]
        %v1911 = vld [vmem:[#allocation20 + $0x78] sm:$0xf]
        %v1912 = vld [vmem:[#allocation20 + $0x7c] sm:$0xf]
        %v1913 = vld [vmem:[#allocation20 + $0x80] sm:$0xf]
        %v1914 = vld [vmem:[#allocation20 + $0x84] sm:$0xf]
        %v1915 = vld [vmem:[#allocation20 + $0x88] sm:$0xf]
        %v1916 = vld [vmem:[#allocation20 + $0x8c] sm:$0xf]
        %v1917 = vld [vmem:[#allocation20 + $0x90] sm:$0xf]
        %v1918 = vld [vmem:[#allocation20 + $0x94] sm:$0xf]
        %v1919 = vld [vmem:[#allocation20 + $0x98] sm:$0xf]
        %v1920 = vld [vmem:[#allocation20 + $0x9c] sm:$0xf]
        %v1921 = vld [vmem:[#allocation20 + $0xa0] sm:$0xf]
        %v1922 = vld [vmem:[#allocation20 + $0xa4] sm:$0xf]
        %v1923 = vld [vmem:[#allocation20 + $0xa8] sm:$0xf]
        %v1924 = vld [vmem:[#allocation20 + $0xac] sm:$0xf]
        %v1925 = vld [vmem:[#allocation20 + $0xb0] sm:$0xf]
        %v1926 = vld [vmem:[#allocation20 + $0xb4] sm:$0xf]
        %v1927 = vld [vmem:[#allocation20 + $0xb8] sm:$0xf]
        %v1928 = vld [vmem:[#allocation20 + $0xbc] sm:$0xf]
        %v1929 = vld [vmem:[#allocation20 + $0xc0] sm:$0xf]
        %v1930 = vld [vmem:[#allocation20 + $0xc4] sm:$0xf]
        %v1931 = vld [vmem:[#allocation20 + $0xc8] sm:$0xf]
        %v1932 = vld [vmem:[#allocation20 + $0xcc] sm:$0xf]
        %v1933 = vld [vmem:[#allocation20 + $0xd0] sm:$0xf]
        %v1934 = vld [vmem:[#allocation20 + $0xd4] sm:$0xf]
        %v1935 = vld [vmem:[#allocation20 + $0xd8] sm:$0xf]
        %v1936 = vld [vmem:[#allocation20 + $0xdc] sm:$0xf]
        %v1937 = vld [vmem:[#allocation20 + $0xe0] sm:$0xf]
        %v1938 = vld [vmem:[#allocation20 + $0xe4] sm:$0xf]
        %v1939 = vld [vmem:[#allocation20 + $0xe8] sm:$0xf]
        %v1940 = vld [vmem:[#allocation20 + $0xec] sm:$0xf]
        %v1941 = vld [vmem:[#allocation20 + $0xf0] sm:$0xf]
        %v1942 = vld [vmem:[#allocation20 + $0xf4] sm:$0xf]
        %v1943 = vld [vmem:[#allocation20 + $0xf8] sm:$0xf]
        %v1944 = vld [vmem:[#allocation20 + $0xfc] sm:$0xf]
        %v1945 = vld [vmem:[%s15] sm:$0x1]
        %v1947 = vperm.slane %v1945, 0
        %v2013 = vunpack.c.l.b16 %v1881
        %v2014 = vunpack.c.l.b16 %v1882
        %v2015 = vunpack.c.l.b16 %v1883
        %v2016 = vunpack.c.l.b16 %v1884
        %v2017 = vunpack.c.l.b16 %v1885
        %v2018 = vunpack.c.l.b16 %v1886
        %v2019 = vunpack.c.l.b16 %v1887
        %v2020 = vunpack.c.l.b16 %v1888
        %v2021 = vunpack.c.l.b16 %v1889
        %v2022 = vunpack.c.l.b16 %v1890
        %v2023 = vunpack.c.l.b16 %v1891
        %v2024 = vunpack.c.l.b16 %v1892
        %v2025 = vunpack.c.l.b16 %v1893
        %v2026 = vunpack.c.l.b16 %v1894
        %v2027 = vunpack.c.l.b16 %v1895
        %v2028 = vunpack.c.l.b16 %v1896
        %v2029 = vunpack.c.l.b16 %v1897
        %v2030 = vunpack.c.l.b16 %v1898
        %v2031 = vunpack.c.l.b16 %v1899
        %v2032 = vunpack.c.l.b16 %v1900
        %v2033 = vunpack.c.l.b16 %v1901
        %v2034 = vunpack.c.l.b16 %v1902
        %v2035 = vunpack.c.l.b16 %v1903
        %v2036 = vunpack.c.l.b16 %v1904
        %v2037 = vunpack.c.l.b16 %v1905
        %v2038 = vunpack.c.l.b16 %v1906
        %v2039 = vunpack.c.l.b16 %v1907
        %v2040 = vunpack.c.l.b16 %v1908
        %v2041 = vunpack.c.l.b16 %v1909
        %v2042 = vunpack.c.l.b16 %v1910
        %v2043 = vunpack.c.l.b16 %v1911
        %v2044 = vunpack.c.l.b16 %v1912
        %v2045 = vunpack.c.l.b16 %v1913
        %v2046 = vunpack.c.l.b16 %v1914
        %v2047 = vunpack.c.l.b16 %v1915
        %v2048 = vunpack.c.l.b16 %v1916
        %v2049 = vunpack.c.l.b16 %v1917
        %v2050 = vunpack.c.l.b16 %v1918
        %v2051 = vunpack.c.l.b16 %v1919
        %v2052 = vunpack.c.l.b16 %v1920
        %v2053 = vunpack.c.l.b16 %v1921
        %v2054 = vunpack.c.l.b16 %v1922
        %v2055 = vunpack.c.l.b16 %v1923
        %v2056 = vunpack.c.l.b16 %v1924
        %v2057 = vunpack.c.l.b16 %v1925
        %v2058 = vunpack.c.l.b16 %v1926
        %v2059 = vunpack.c.l.b16 %v1927
        %v2060 = vunpack.c.l.b16 %v1928
        %v2061 = vunpack.c.l.b16 %v1929
        %v2062 = vunpack.c.l.b16 %v1930
        %v2063 = vunpack.c.l.b16 %v1931
        %v2064 = vunpack.c.l.b16 %v1932
        %v2065 = vunpack.c.l.b16 %v1933
        %v2066 = vunpack.c.l.b16 %v1934
        %v2067 = vunpack.c.l.b16 %v1935
        %v2068 = vunpack.c.l.b16 %v1936
        %v2069 = vunpack.c.l.b16 %v1937
        %v2070 = vunpack.c.l.b16 %v1938
        %v2071 = vunpack.c.l.b16 %v1939
        %v2072 = vunpack.c.l.b16 %v1940
        %v2073 = vunpack.c.l.b16 %v1941
        %v2074 = vunpack.c.l.b16 %v1942
        %v2075 = vunpack.c.l.b16 %v1943
        %v2076 = vunpack.c.l.b16 %v1944
        %v2077 = vpack.c.b16 %v2014, %v2013
        %v2078 = vpack.c.b16 %v2016, %v2015
        %v2079 = vpack.c.b16 %v2018, %v2017
        %v2080 = vpack.c.b16 %v2020, %v2019
        %v2081 = vpack.c.b16 %v2022, %v2021
        %v2082 = vpack.c.b16 %v2024, %v2023
        %v2083 = vpack.c.b16 %v2026, %v2025
        %v2084 = vpack.c.b16 %v2028, %v2027
        %v2085 = vpack.c.b16 %v2030, %v2029
        %v2086 = vpack.c.b16 %v2032, %v2031
        %v2087 = vpack.c.b16 %v2034, %v2033
        %v2088 = vpack.c.b16 %v2036, %v2035
        %v2089 = vpack.c.b16 %v2038, %v2037
        %v2090 = vpack.c.b16 %v2040, %v2039
        %v2091 = vpack.c.b16 %v2042, %v2041
        %v2092 = vpack.c.b16 %v2044, %v2043
        %v2093 = vpack.c.b16 %v2046, %v2045
        %v2094 = vpack.c.b16 %v2048, %v2047
        %v2095 = vpack.c.b16 %v2050, %v2049
        %v2096 = vpack.c.b16 %v2052, %v2051
        %v2097 = vpack.c.b16 %v2054, %v2053
        %v2098 = vpack.c.b16 %v2056, %v2055
        %v2099 = vpack.c.b16 %v2058, %v2057
        %v2100 = vpack.c.b16 %v2060, %v2059
        %v2101 = vpack.c.b16 %v2062, %v2061
        %v2102 = vpack.c.b16 %v2064, %v2063
        %v2103 = vpack.c.b16 %v2066, %v2065
        %v2104 = vpack.c.b16 %v2068, %v2067
        %v2105 = vpack.c.b16 %v2070, %v2069
        %v2106 = vpack.c.b16 %v2072, %v2071
        %v2107 = vpack.c.b16 %v2074, %v2073
        %v2108 = vpack.c.b16 %v2076, %v2075
        %2141 = vmatpush.bf16.msra.mxu0 %v2084
        %2142 = vmatpush.bf16.msra.mxu0 %v2083
        %2143 = vmatpush.bf16.msra.mxu0 %v2082
        %2144 = vmatpush.bf16.msra.mxu0 %v2081
        %2145 = vmatpush.bf16.msra.mxu0 %v2080
        %2146 = vmatpush.bf16.msra.mxu0 %v2079
        %2147 = vmatpush.bf16.msra.mxu0 %v2078
        %2148 = vmatpush.bf16.msra.mxu0 %v2077
        %2149 = vmatmul.bf16.gmra.mxu0 %v1877
        %v2150 = vpop.f32.mrf.mxu0
        %v2151 = vadd.f32 %v1947, %v2150
        %v2152 = vpop.f32.mrf.mxu0
        %2153 = vdwg.mxu0
        %2154 = vmatpush.bf16.msra.mxu0 %v2092
        %2155 = vmatpush.bf16.msra.mxu0 %v2091
        %2156 = vmatpush.bf16.msra.mxu0 %v2090
        %2157 = vmatpush.bf16.msra.mxu0 %v2089
        %2158 = vmatpush.bf16.msra.mxu0 %v2088
        %2159 = vmatpush.bf16.msra.mxu0 %v2087
        %2160 = vmatpush.bf16.msra.mxu0 %v2086
        %2161 = vmatpush.bf16.msra.mxu0 %v2085
        %2162 = vmatmul.bf16.gmra.mxu0 %v1878
        %v2163 = vpop.f32.mrf.mxu0
        %v2164 = vadd.f32 %v2151, %v2163
        %v2165 = vpop.f32.mrf.mxu0
        %2166 = vdwg.mxu0
        %2167 = vmatpush.bf16.msra.mxu0 %v2100
        %2168 = vmatpush.bf16.msra.mxu0 %v2099
        %2169 = vmatpush.bf16.msra.mxu0 %v2098
        %2170 = vmatpush.bf16.msra.mxu0 %v2097
        %2171 = vmatpush.bf16.msra.mxu0 %v2096
        %2172 = vmatpush.bf16.msra.mxu0 %v2095
        %2173 = vmatpush.bf16.msra.mxu0 %v2094
        %2174 = vmatpush.bf16.msra.mxu0 %v2093
        %2175 = vmatmul.bf16.gmra.mxu0 %v1879
        %v2176 = vpop.f32.mrf.mxu0
        %v2177 = vadd.f32 %v2164, %v2176
        %v2178 = vpop.f32.mrf.mxu0
        %2179 = vdwg.mxu0
        %2180 = vmatpush.bf16.msra.mxu0 %v2108
        %2181 = vmatpush.bf16.msra.mxu0 %v2107
        %2182 = vmatpush.bf16.msra.mxu0 %v2106
        %2183 = vmatpush.bf16.msra.mxu0 %v2105
        %2184 = vmatpush.bf16.msra.mxu0 %v2104
        %2185 = vmatpush.bf16.msra.mxu0 %v2103
        %2186 = vmatpush.bf16.msra.mxu0 %v2102
        %2187 = vmatpush.bf16.msra.mxu0 %v2101
        %2188 = vmatmul.bf16.gmra.mxu0 %v1880
        %v2189 = vpop.f32.mrf.mxu0
        %v2190 = vadd.f32 %v2177, %v2189
        %v2191 = vpop.f32.mrf.mxu0
        %2192 = vdwg.mxu0
        %v2193 = vadd.f32 %v1507, %v2190
        %2194 = vst [vmem:[%s742] sm:$0xff] %v2193
        %s2195 = sand.u32 %s414, 1
        %s2196 = scalar_lea.sflag [#allocation8], %s2195
        %s2197 = sand.u32 %s414, 1
        %s2198 = smul.addr %s2197, 8
        %s2199 = scalar_lea.vmem [#allocation21], %s2198
        %s2200 = sand.u32 %s442, 1
        %s2201 = scalar_lea.sflag [#allocation23], %s2200
        %s2202 = sand.u32 %s442, 1
        %s2203 = smul.addr %s2202, 32
        %s2204 = scalar_lea.vmem [#allocation22], %s2203
        // Predicated region
        $region121: #{tpu_custom_call.1} parent=83 // pred_check
          %p2205 = pneg %p424
        $region122: #{tpu_custom_call.1} parent=83 // pred_check_branch
          %2207 = sbr.rel (%p2205) target = $region124
        $region123: #{tpu_custom_call.1} parent=83 // pred_region
          %2209 = vsyncadd %s2196, 0
          %s2210 = smul.addr %s48, 2
          %s2211 = sadd.s32 %s49, %s2210
          %s2212 = smul.addr %s2211, 8
          %s2213 = scalar_lea.hbm %s16, %s2212
          %s2215 = sshll.u32 %s2199, 4
          %s2216 = int_to_ptr.vmem [resolvable:$true] %s2215
          %s2217 = sshll.u32 %s2213, 4
          %s2218 = int_to_ptr.hbm [resolvable:$true] %s2217
          %2220 = dma.vmem_to_hbm [thread:$0]  %s2216, 128, %s2218, %s2196
        $region124: #{tpu_custom_call.1} parent=83 // pred_fallthru
          _
        // Predicated region
        $region125: #{tpu_custom_call.1} parent=83 // pred_check
          %p2221 = pneg %p452
        $region126: #{tpu_custom_call.1} parent=83 // pred_check_branch
          %2223 = sbr.rel (%p2221) target = $region128
        $region127: #{tpu_custom_call.1} parent=83 // pred_region
          %2225 = vsyncadd %s2201, 0
          %s2226 = smul.addr %s48, 8
          %s2227 = sadd.s32 %s49, %s2226
          %s2228 = smul.addr %s2227, 8
          %s2229 = scalar_lea.hbm %s17, %s2228
          %s2230 = sshll.u32 %s2204, 4
          %s2231 = int_to_ptr.vmem [resolvable:$true] %s2230
          %s2232 = sshll.u32 %s2229, 4
          %s2233 = int_to_ptr.hbm [resolvable:$true] %s2232
          %2238 = dma.vmem_to_hbm [thread:$0]  %s2231, 512, %s2233, %s2201, 128, 256, 8
        $region128: #{tpu_custom_call.1} parent=83 // pred_fallthru
          _
      $region84: #{tpu_custom_call.1} parent=5 // pred_fallthru
        _
      %p2239 = scmp.le.s32.totalorder 2, %s39
      // Predicated region
      $region129: #{tpu_custom_call.1} parent=5 // pred_check
        %p2240 = pneg %p2239
      $region130: #{tpu_custom_call.1} parent=5 // pred_check_branch
        %2242 = sbr.rel (%p2240) target = $region132
      $region131: #{tpu_custom_call.1} parent=5 // pred_region
        %s2243 = ssub.s32 %s39, 2
        // Predicated region
        $region133: #{tpu_custom_call.1} parent=131 // pred_check
          %p2244 = pneg %p430
        $region134: #{tpu_custom_call.1} parent=131 // pred_check_branch
          %2246 = sbr.rel (%p2244) target = $region136
        $region135: #{tpu_custom_call.1} parent=131 // pred_region
          %s2247 = sand.u32 %s415, 1
          %s2248 = scalar_lea.sflag [#allocation8], %s2247
          %s2249 = sand.u32 %s415, 1
          %s2250 = smul.addr %s2249, 8
          %s2251 = scalar_lea.vmem [#allocation21], %s2250
          %2253 = dma.done %s2248, 128
        $region136: #{tpu_custom_call.1} parent=131 // pred_fallthru
          _
        // Predicated region
        $region137: #{tpu_custom_call.1} parent=131 // pred_check
          %p2254 = pneg %p458
        $region138: #{tpu_custom_call.1} parent=131 // pred_check_branch
          %2256 = sbr.rel (%p2254) target = $region140
        $region139: #{tpu_custom_call.1} parent=131 // pred_region
          %s2257 = sand.u32 %s443, 1
          %s2258 = scalar_lea.sflag [#allocation23], %s2257
          %s2259 = sand.u32 %s443, 1
          %s2260 = smul.addr %s2259, 32
          %s2261 = scalar_lea.vmem [#allocation22], %s2260
          %2263 = dma.done %s2258, 512
        $region140: #{tpu_custom_call.1} parent=131 // pred_fallthru
          _
      $region132: #{tpu_custom_call.1} parent=5 // pred_fallthru
        _
    $region6: #{tpu_custom_call.1} parent=1 // loop_footer
      %s43 = sadd.s32 1, %s39
    $region7: #{tpu_custom_call.1} parent=1 // loop_footer_branch
      %38 = sbr.rel target = $region3
    $region8: #{tpu_custom_call.1} parent=1 // loop_exit
      _
    %2264 = vsyncpa [#allocation7], 1
    %s2265 = scalar_lea.sflag [#allocation7], 1
    %2266 = vsyncpa %s2265, 1
    %2267 = vsyncpa [#allocation10], 1
    %s2268 = scalar_lea.sflag [#allocation10], 1
    %2269 = vsyncpa %s2268, 1
    %2270 = vsyncpa [#allocation13], 1
    %2271 = vsyncpa [#allocation16], 1
    %2272 = vsyncpa [#allocation19], 1
    %2273 = vsyncpa [#allocation8], 1
    %s2274 = scalar_lea.sflag [#allocation8], 1
    %2275 = vsyncpa %s2274, 1
    %2276 = vsyncpa [#allocation23], 1
    %s2277 = scalar_lea.sflag [#allocation23], 1
    %2278 = vsyncpa %s2277, 1

</llo_original>
